<compile_context>
chip_gen: v7x
topology: tpu7x:2x2x1
jax: 0.10.0
libtpu: 0.0.40
codegen_flags: <defaults>
</compile_context>

<pallas_src>
from functools import partial

import jax
import jax.numpy as jnp
from jax.experimental import pallas as pl
from jax.experimental.pallas import tpu as pltpu


def sage_conv_kernel(kidx_ref, kcnt_ref,                 # scalar prefetch (SMEM)
                     adj_ref, hs_ref, hd_ref,            # streamed / per-tile inputs
                     w_self_ref, w_neigh_ref, b_ref,     # grid-invariant inputs
                     o_ref,                              # resident output (constant over k)
                     acc_ref, deg_ref):                  # VMEM scratch
    """Grid = (dst_tiles, src_tiles); src axis is the reduction axis (last).

    kidx_ref    : [nI, nK] i32   compacted non-empty src-tile indices per dst tile
    kcnt_ref    : [nI]     i32   number of non-empty src tiles per dst tile
    adj_ref     : [TM, TK]          int8   0/1 adjacency tile (dst x src)
    hs_ref      : [TK, F_IN_P]      bf16   source features (zero padded)
    hd_ref      : [TM, F_IN_P]      bf16   destination features (zero padded)
    w_self_ref  : [F_IN_P, F_OUT_P] bf16   Linear cols acting on h_d
    w_neigh_ref : [F_IN_P, F_OUT_P] bf16   Linear cols acting on h_neigh
    b_ref       : [1, F_OUT_P]      f32
    o_ref       : [TM, F_OUT_P]     f32    resident across k
    acc_ref     : [TM, F_IN_P]      f32    sum_k A_tile @ h_s_tile
    deg_ref     : [TM, 1]           f32    in-degree
    """
    i = pl.program_id(0)
    k = pl.program_id(1)

    # k == 0: zero the neighbor accumulators and emit the self path
    # (h_d @ W_self + b) into the resident output.  Doing it here instead of in
    # the k==last epilogue balances per-step cost across the pipeline.
    @pl.when(k == 0)
    def _():
        acc_ref[...] = jnp.zeros_like(acc_ref)
        deg_ref[...] = jnp.zeros_like(deg_ref)
        o_ref[...] = (jnp.dot(hd_ref[...], w_self_ref[...],
                              preferred_element_type=jnp.float32)
                      + b_ref[...])

    # Streamed neighbor reduction over the compacted source-tile axis.
    # Only the first kcnt[i] steps carry a real (non-empty) adjacency tile;
    # padded steps repeat the previous block index (no DMA) and are skipped here.
    @pl.when(k < kcnt_ref[i])
    def _():
        adj_bf16 = adj_ref[...].astype(jnp.bfloat16)        # i8 0/1 -> bf16 (exact)
        acc_ref[...] += jnp.dot(adj_bf16, hs_ref[...],
                                preferred_element_type=jnp.float32)
        # in-degree via a lane (XLU) row-sum; free slot under the MXU/DMA-bound loop
        deg_ref[...] += jnp.sum(adj_ref[...].astype(jnp.float32),
                                axis=1, keepdims=True)

    # k == last: add the degree-normalized neighbor path.
    @pl.when(k == pl.num_programs(1) - 1)
    def _():
        deg = deg_ref[...]
        inv = pl.reciprocal(deg, approx=True)               # EUP slot, ~free
        inv = jnp.where(deg > 0.0, inv, 0.0)                # DGL mean -> 0 if no neighbors
        # 1/deg row-scaling commutes with the matmul; applying it after the dot
        # touches [TM, F_OUT_P] instead of [TM, F_IN_P].
        neigh = jnp.dot(acc_ref[...].astype(jnp.bfloat16), w_neigh_ref[...],
                        preferred_element_type=jnp.float32)
        o_ref[...] = o_ref[...] + neigh * inv


def _round_up(x, m):
    return (x + m - 1) // m * m


@partial(jax.jit, static_argnames=("tm", "tk"))
def sage_conv(adj, h_s, h_d, weight, bias, *, tm=256, tk=512):
    """adj: [N_dst, N_src] 0/1; weight: [F_out, 2*F_in] (nn.Linear layout); bias: [F_out].

    Tile defaults suit v5e/v6e; on v7x (64 MiB VMEM, 2 TensorCores) keep tm<=256
    and make sure N_dst/tm >= 2 so the 'parallel' dst axis feeds both cores.
    """
    n_dst, n_src = adj.shape
    f_in = h_s.shape[1]
    f_out = weight.shape[0]

    assert tm % 32 == 0 and tk % 128 == 0, "tiles must respect TPU (sublane, lane) tiling"

    n_dst_p = _round_up(n_dst, tm)
    n_src_p = _round_up(n_src, tk)
    f_in_p = _round_up(f_in, 128)      # no "+1 degree lane" -> no 128-boundary blowup
    f_out_p = _round_up(f_out, 128)    # lane-dense output -> unmasked stores

    n_i = n_dst_p // tm
    n_k = n_src_p // tk

    # int8 adjacency in HBM (0/1 exact); upcast to bf16 inside the kernel.
    adj_p = jnp.zeros((n_dst_p, n_src_p), jnp.int8)
    adj_p = adj_p.at[:n_dst, :n_src].set(adj.astype(jnp.int8))

    # bf16 MXU operands; accumulation stays f32 via preferred_element_type.
    h_s_p = jnp.zeros((n_src_p, f_in_p), jnp.bfloat16)
    h_s_p = h_s_p.at[:n_src, :f_in].set(h_s.astype(jnp.bfloat16))
    h_d_p = jnp.zeros((n_dst_p, f_in_p), jnp.bfloat16)
    h_d_p = h_d_p.at[:n_dst, :f_in].set(h_d.astype(jnp.bfloat16))

    # Linear(concat([h_d, h_neigh], 1)) == h_d @ W_self + h_neigh @ W_neigh + b
    w_self_p = jnp.zeros((f_in_p, f_out_p), jnp.bfloat16)
    w_self_p = w_self_p.at[:f_in, :f_out].set(
        jnp.transpose(weight[:, :f_in]).astype(jnp.bfloat16))
    w_neigh_p = jnp.zeros((f_in_p, f_out_p), jnp.bfloat16)
    w_neigh_p = w_neigh_p.at[:f_in, :f_out].set(
        jnp.transpose(weight[:, f_in:]).astype(jnp.bfloat16))
    b_p = jnp.zeros((1, f_out_p), jnp.float32).at[0, :f_out].set(bias.astype(jnp.float32))

    # Per-dst-tile src-tile occupancy -> compacted k index list (scalar prefetch),
    # so all-zero adjacency tiles are neither DMA'd nor multiplied.
    occ = (adj_p.reshape(n_i, tm, n_k, tk) != 0).any(axis=(1, 3))          # [n_i, n_k]
    kcnt = occ.sum(axis=1).astype(jnp.int32)                               # [n_i]
    order = jnp.argsort((~occ).astype(jnp.int32), axis=1,
                        stable=True).astype(jnp.int32)                     # non-empty first
    pos = jnp.arange(n_k, dtype=jnp.int32)[None, :]
    last = jnp.take_along_axis(order, jnp.maximum(kcnt - 1, 0)[:, None], axis=1)
    kidx = jnp.where(pos < kcnt[:, None], order, last).astype(jnp.int32)   # [n_i, n_k]

    out_p = pl.pallas_call(
        sage_conv_kernel,
        out_shape=jax.ShapeDtypeStruct((n_dst_p, f_out_p), jnp.float32),
        grid_spec=pltpu.PrefetchScalarGridSpec(
            num_scalar_prefetch=2,
            grid=(n_i, n_k),
            in_specs=[
                # adjacency tile, compacted src-tile axis
                pl.BlockSpec((tm, tk), lambda i, k, kidx, kcnt: (i, kidx[i, k])),
                # source features, same compacted axis
                pl.BlockSpec((tk, f_in_p), lambda i, k, kidx, kcnt: (kidx[i, k], 0)),
                # destination features (constant across k)
                pl.BlockSpec((tm, f_in_p), lambda i, k, kidx, kcnt: (i, 0)),
                # grid-invariant operands: single-buffered (VMEM headroom, esp. v7x)
                pl.BlockSpec((f_in_p, f_out_p), lambda i, k, kidx, kcnt: (0, 0),
                             pipeline_mode=pl.Buffered(1)),
                pl.BlockSpec((f_in_p, f_out_p), lambda i, k, kidx, kcnt: (0, 0),
                             pipeline_mode=pl.Buffered(1)),
                pl.BlockSpec((1, f_out_p), lambda i, k, kidx, kcnt: (0, 0),
                             pipeline_mode=pl.Buffered(1)),
            ],
            out_specs=pl.BlockSpec((tm, f_out_p), lambda i, k, kidx, kcnt: (i, 0)),
            scratch_shapes=[
                pltpu.VMEM((tm, f_in_p), jnp.float32),   # sum_k A_tile @ h_s_tile
                pltpu.VMEM((tm, 1), jnp.float32),        # in-degree
            ],
        ),
        compiler_params=pltpu.CompilerParams(
            dimension_semantics=("parallel", "arbitrary"),
            vmem_limit_bytes=48 * 1024 * 1024,
        ),
    )(kidx, kcnt, adj_p, h_s_p, h_d_p, w_self_p, w_neigh_p, b_p)

    return out_p[:n_dst, :f_out]


def sage_conv_ref(adj, h_s, h_d, weight, bias):
    """Pure-JAX reference mirroring the PyTorch/DGL forward (f32)."""
    deg = adj.sum(axis=1, keepdims=True)
    h_neigh = (adj @ h_s) / jnp.maximum(deg, 1.0)
    h_neigh = jnp.where(deg > 0, h_neigh, 0.0)
    cat = jnp.concatenate([h_d, h_neigh], axis=1)
    return cat @ weight.T + bias


if __name__ == "__main__":
    key = jax.random.PRNGKey(0)
    k_adj, k_hs, k_hd, k_w, k_b = jax.random.split(key, 5)

    # Small shapes -> multi-tile grid (2 dst tiles x 2 src tiles) with tm=128, tk=256.
    N_SRC, N_DST, F_IN, F_OUT = 512, 256, 16, 32

    adj = (jax.random.uniform(k_adj, (N_DST, N_SRC)) < 0.3).astype(jnp.float32)
    h_s = jax.random.normal(k_hs, (N_SRC, F_IN), dtype=jnp.float32)
    h_d = jax.random.normal(k_hd, (N_DST, F_IN), dtype=jnp.float32)

    # nn.Linear(in_feat*2, out_feat) init: U(-1/sqrt(fan_in), 1/sqrt(fan_in)).
    fan_in = 2 * F_IN
    bound = 1.0 / (fan_in ** 0.5)
    weight = jax.random.uniform(k_w, (F_OUT, fan_in), minval=-bound, maxval=bound,
                                dtype=jnp.float32)
    bias = jax.random.uniform(k_b, (F_OUT,), minval=-bound, maxval=bound,
                              dtype=jnp.float32)

    # Dense-ish graph.
    out = sage_conv(adj, h_s, h_d, weight, bias, tm=128, tk=256)
    out = jax.block_until_ready(out)
    ref = sage_conv_ref(adj, h_s, h_d, weight, bias)
    assert out.shape == (N_DST, F_OUT)
    assert jnp.allclose(out, ref, atol=2e-2, rtol=2e-2), "mismatch vs reference (dense)"

    # Sparse graph: one all-zero (dst-tile, src-tile) block and a few zero-degree
    # destination rows -> exercises the tile-skipping and deg==0 paths.
    adj_sp = adj.at[:128, 256:].set(0.0).at[:5, :].set(0.0)
    out_sp = sage_conv(adj_sp, h_s, h_d, weight, bias, tm=128, tk=256)
    out_sp = jax.block_until_ready(out_sp)
    ref_sp = sage_conv_ref(adj_sp, h_s, h_d, weight, bias)
    assert jnp.allclose(out_sp, ref_sp, atol=2e-2, rtol=2e-2), "mismatch vs reference (sparse)"

    print("KERNEL_OK")
</pallas_src>

<mosaic_0001>
module attributes {stable_mosaic.version = 11 : i64} {
  func.func @sage_conv_kernel(%arg0: i32, %arg1: i32, %arg2: memref<2x2xi32, #tpu.memory_space<smem>>, %arg3: memref<2xi32, #tpu.memory_space<smem>>, %arg4: memref<128x256xi8, #tpu.memory_space<vmem>>, %arg5: memref<256x128xbf16, #tpu.memory_space<vmem>>, %arg6: memref<128x128xbf16, #tpu.memory_space<vmem>>, %arg7: memref<128x128xbf16, #tpu.memory_space<vmem>>, %arg8: memref<128x128xbf16, #tpu.memory_space<vmem>>, %arg9: memref<1x128xf32, #tpu.memory_space<vmem>>, %arg10: memref<128x128xf32, #tpu.memory_space<vmem>>, %arg11: memref<128x128xf32, #tpu.memory_space<vmem>>, %arg12: memref<128x1xf32, #tpu.memory_space<vmem>>) attributes {dimension_semantics = [#tpu.dimension_semantics<parallel>, #tpu.dimension_semantics<arbitrary>], iteration_bounds = array<i64: 2, 2>, scalar_prefetch = 2 : i64, scratch_operands = 2 : i64, tpu.core_type = #tpu.core_type<tc>, window_params = [{transform_indices = @transform_0, window_bounds = array<i64: 128, 256>}, {transform_indices = @transform_1, window_bounds = array<i64: 256, 128>}, {transform_indices = @transform_2, window_bounds = array<i64: 128, 128>}, {pipeline_mode = #tpu.pipeline_mode<synchronous>, transform_indices = @transform_3, window_bounds = array<i64: 128, 128>}, {pipeline_mode = #tpu.pipeline_mode<synchronous>, transform_indices = @transform_4, window_bounds = array<i64: 128, 128>}, {pipeline_mode = #tpu.pipeline_mode<synchronous>, transform_indices = @transform_5, window_bounds = array<i64: 1, 128>}, {transform_indices = @transform_6, window_bounds = array<i64: 128, 128>}]} {
    %c0_i32 = arith.constant 0 : i32
    %0 = arith.cmpi eq, %arg1, %c0_i32 : i32
    %1 = arith.extui %0 : i1 to i32
    %c0_i32_0 = arith.constant 0 : i32
    %2 = arith.cmpi ne, %1, %c0_i32_0 : i32
    scf.if %2 {
      %cst = arith.constant 0.000000e+00 : f32
      %11 = vector.broadcast %cst : f32 to vector<128x128xf32>
      %c0 = arith.constant 0 : index
      %c0_3 = arith.constant 0 : index
      %12 = vector.load %arg11[%c0, %c0_3] : memref<128x128xf32, #tpu.memory_space<vmem>>, vector<128x128xf32>
      tpu.vector_store %arg11[%c0, %c0_3], %11 {strides = array<i32>} : memref<128x128xf32, #tpu.memory_space<vmem>>, vector<128x128xf32>,
      %cst_4 = arith.constant 0.000000e+00 : f32
      %13 = vector.broadcast %cst_4 : f32 to vector<128x1xf32>
      %c0_5 = arith.constant 0 : index
      %c0_6 = arith.constant 0 : index
      %14 = vector.load %arg12[%c0_5, %c0_6] : memref<128x1xf32, #tpu.memory_space<vmem>>, vector<128x1xf32>
      tpu.vector_store %arg12[%c0_5, %c0_6], %13 {strides = array<i32>} : memref<128x1xf32, #tpu.memory_space<vmem>>, vector<128x1xf32>,
      %c0_7 = arith.constant 0 : index
      %c0_8 = arith.constant 0 : index
      %15 = vector.load %arg6[%c0_7, %c0_8] : memref<128x128xbf16, #tpu.memory_space<vmem>>, vector<128x128xbf16>
      %c0_9 = arith.constant 0 : index
      %c0_10 = arith.constant 0 : index
      %16 = vector.load %arg7[%c0_9, %c0_10] : memref<128x128xbf16, #tpu.memory_space<vmem>>, vector<128x128xbf16>
      %cst_11 = arith.constant dense<0.000000e+00> : vector<128x128xf32>
      %17 = tpu.matmul %15, %16, %cst_11 {dimension_numbers = #tpu.dot_dimension_numbers<[1], [0], [0], [1], [0, 0, 1, 1], [], []>} : vector<128x128xbf16>, vector<128x128xbf16>, vector<128x128xf32> -> vector<128x128xf32>
      %c0_12 = arith.constant 0 : index
      %c0_13 = arith.constant 0 : index
      %18 = vector.load %arg9[%c0_12, %c0_13] : memref<1x128xf32, #tpu.memory_space<vmem>>, vector<1x128xf32>
      %19 = vector.broadcast %18 : vector<1x128xf32> to vector<128x128xf32>
      %20 = arith.addf %17, %19 : vector<128x128xf32>
      %c0_14 = arith.constant 0 : index
      %c0_15 = arith.constant 0 : index
      %21 = vector.load %arg10[%c0_14, %c0_15] : memref<128x128xf32, #tpu.memory_space<vmem>>, vector<128x128xf32>
      tpu.vector_store %arg10[%c0_14, %c0_15], %20 {strides = array<i32>} : memref<128x128xf32, #tpu.memory_space<vmem>>, vector<128x128xf32>,
    } else {
    }
    %3 = arith.index_cast %arg0 : i32 to index
    %4 = memref.load %arg3[%3] : memref<2xi32, #tpu.memory_space<smem>>
    %5 = arith.cmpi slt, %arg1, %4 : i32
    %6 = arith.extui %5 : i1 to i32
    %c0_i32_1 = arith.constant 0 : i32
    %7 = arith.cmpi ne, %6, %c0_i32_1 : i32
    scf.if %7 {
      %c0 = arith.constant 0 : index
      %c0_3 = arith.constant 0 : index
      %11 = vector.load %arg4[%c0, %c0_3] : memref<128x256xi8, #tpu.memory_space<vmem>>, vector<128x256xi8>
      %12 = arith.sitofp %11 : vector<128x256xi8> to vector<128x256xbf16>
      %c0_4 = arith.constant 0 : index
      %c0_5 = arith.constant 0 : index
      %13 = vector.load %arg11[%c0_4, %c0_5] : memref<128x128xf32, #tpu.memory_space<vmem>>, vector<128x128xf32>
      %c0_6 = arith.constant 0 : index
      %c0_7 = arith.constant 0 : index
      %14 = vector.load %arg5[%c0_6, %c0_7] : memref<256x128xbf16, #tpu.memory_space<vmem>>, vector<256x128xbf16>
      %cst = arith.constant dense<0.000000e+00> : vector<128x128xf32>
      %15 = tpu.matmul %12, %14, %cst {dimension_numbers = #tpu.dot_dimension_numbers<[1], [0], [0], [1], [0, 0, 1, 1], [], []>} : vector<128x256xbf16>, vector<256x128xbf16>, vector<128x128xf32> -> vector<128x128xf32>
      %16 = arith.addf %13, %15 : vector<128x128xf32>
      %c0_8 = arith.constant 0 : index
      %c0_9 = arith.constant 0 : index
      %17 = vector.load %arg11[%c0_8, %c0_9] : memref<128x128xf32, #tpu.memory_space<vmem>>, vector<128x128xf32>
      tpu.vector_store %arg11[%c0_8, %c0_9], %16 {strides = array<i32>} : memref<128x128xf32, #tpu.memory_space<vmem>>, vector<128x128xf32>,
      %c0_10 = arith.constant 0 : index
      %c0_11 = arith.constant 0 : index
      %18 = vector.load %arg12[%c0_10, %c0_11] : memref<128x1xf32, #tpu.memory_space<vmem>>, vector<128x1xf32>
      %c0_12 = arith.constant 0 : index
      %c0_13 = arith.constant 0 : index
      %19 = vector.load %arg4[%c0_12, %c0_13] : memref<128x256xi8, #tpu.memory_space<vmem>>, vector<128x256xi8>
      %20 = arith.sitofp %19 : vector<128x256xi8> to vector<128x256xf32>
      %cst_14 = arith.constant dense<0.000000e+00> : vector<128xf32>
      %21 = vector.multi_reduction <add>, %20, %cst_14 [1] : vector<128x256xf32> to vector<128xf32>
      %22 = vector.shape_cast %21 : vector<128xf32> to vector<128x1xf32>
      %23 = arith.addf %18, %22 : vector<128x1xf32>
      %c0_15 = arith.constant 0 : index
      %c0_16 = arith.constant 0 : index
      %24 = vector.load %arg12[%c0_15, %c0_16] : memref<128x1xf32, #tpu.memory_space<vmem>>, vector<128x1xf32>
      tpu.vector_store %arg12[%c0_15, %c0_16], %23 {strides = array<i32>} : memref<128x1xf32, #tpu.memory_space<vmem>>, vector<128x1xf32>,
    } else {
    }
    %c1_i32 = arith.constant 1 : i32
    %8 = arith.cmpi eq, %arg1, %c1_i32 : i32
    %9 = arith.extui %8 : i1 to i32
    %c0_i32_2 = arith.constant 0 : i32
    %10 = arith.cmpi ne, %9, %c0_i32_2 : i32
    scf.if %10 {
      %c0 = arith.constant 0 : index
      %c0_3 = arith.constant 0 : index
      %11 = vector.load %arg12[%c0, %c0_3] : memref<128x1xf32, #tpu.memory_space<vmem>>, vector<128x1xf32>
      %12 = tpu.reciprocal %11 {approx = true} : vector<128x1xf32> -> vector<128x1xf32>
      %cst = arith.constant 0.000000e+00 : f32
      %13 = vector.broadcast %cst : f32 to vector<128x1xf32>
      %14 = arith.cmpf ogt, %11, %13 : vector<128x1xf32>
      %cst_4 = arith.constant 0.000000e+00 : f32
      %15 = vector.broadcast %cst_4 : f32 to vector<128x1xf32>
      %16 = arith.select %14, %12, %15 : vector<128x1xi1>, vector<128x1xf32>
      %c0_5 = arith.constant 0 : index
      %c0_6 = arith.constant 0 : index
      %17 = vector.load %arg11[%c0_5, %c0_6] : memref<128x128xf32, #tpu.memory_space<vmem>>, vector<128x128xf32>
      %18 = arith.truncf %17 : vector<128x128xf32> to vector<128x128xbf16>
      %c0_7 = arith.constant 0 : index
      %c0_8 = arith.constant 0 : index
      %19 = vector.load %arg8[%c0_7, %c0_8] : memref<128x128xbf16, #tpu.memory_space<vmem>>, vector<128x128xbf16>
      %cst_9 = arith.constant dense<0.000000e+00> : vector<128x128xf32>
      %20 = tpu.matmul %18, %19, %cst_9 {dimension_numbers = #tpu.dot_dimension_numbers<[1], [0], [0], [1], [0, 0, 1, 1], [], []>} : vector<128x128xbf16>, vector<128x128xbf16>, vector<128x128xf32> -> vector<128x128xf32>
      %c0_10 = arith.constant 0 : index
      %c0_11 = arith.constant 0 : index
      %21 = vector.load %arg10[%c0_10, %c0_11] : memref<128x128xf32, #tpu.memory_space<vmem>>, vector<128x128xf32>
      %22 = vector.broadcast %16 : vector<128x1xf32> to vector<128x128xf32>
      %23 = arith.mulf %20, %22 : vector<128x128xf32>
      %24 = arith.addf %21, %23 : vector<128x128xf32>
      %c0_12 = arith.constant 0 : index
      %c0_13 = arith.constant 0 : index
      %25 = vector.load %arg10[%c0_12, %c0_13] : memref<128x128xf32, #tpu.memory_space<vmem>>, vector<128x128xf32>
      tpu.vector_store %arg10[%c0_12, %c0_13], %24 {strides = array<i32>} : memref<128x128xf32, #tpu.memory_space<vmem>>, vector<128x128xf32>,
    } else {
    }
    return
  }
  func.func @transform_0(%arg0: i32, %arg1: i32, %arg2: memref<2x2xi32, #tpu.memory_space<smem>>, %arg3: memref<2xi32, #tpu.memory_space<smem>>) -> (i32, i32) {
    %0 = arith.index_cast %arg0 : i32 to index
    %1 = arith.index_cast %arg1 : i32 to index
    %2 = memref.load %arg2[%0, %1] : memref<2x2xi32, #tpu.memory_space<smem>>
    %c0_i32 = arith.constant 0 : i32
    return %arg0, %2 : i32, i32
  }
  func.func @transform_1(%arg0: i32, %arg1: i32, %arg2: memref<2x2xi32, #tpu.memory_space<smem>>, %arg3: memref<2xi32, #tpu.memory_space<smem>>) -> (i32, i32) {
    %0 = arith.index_cast %arg0 : i32 to index
    %1 = arith.index_cast %arg1 : i32 to index
    %2 = memref.load %arg2[%0, %1] : memref<2x2xi32, #tpu.memory_space<smem>>
    %c0_i32 = arith.constant 0 : i32
    %c0_i32_0 = arith.constant 0 : i32
    return %2, %c0_i32 : i32, i32
  }
  func.func @transform_2(%arg0: i32, %arg1: i32, %arg2: memref<2x2xi32, #tpu.memory_space<smem>>, %arg3: memref<2xi32, #tpu.memory_space<smem>>) -> (i32, i32) {
    %c0_i32 = arith.constant 0 : i32
    %c0_i32_0 = arith.constant 0 : i32
    return %arg0, %c0_i32 : i32, i32
  }
  func.func @transform_3(%arg0: i32, %arg1: i32, %arg2: memref<2x2xi32, #tpu.memory_space<smem>>, %arg3: memref<2xi32, #tpu.memory_space<smem>>) -> (i32, i32) {
    %c0_i32 = arith.constant 0 : i32
    %c0_i32_0 = arith.constant 0 : i32
    %c0_i32_1 = arith.constant 0 : i32
    return %c0_i32, %c0_i32_0 : i32, i32
  }
  func.func @transform_4(%arg0: i32, %arg1: i32, %arg2: memref<2x2xi32, #tpu.memory_space<smem>>, %arg3: memref<2xi32, #tpu.memory_space<smem>>) -> (i32, i32) {
    %c0_i32 = arith.constant 0 : i32
    %c0_i32_0 = arith.constant 0 : i32
    %c0_i32_1 = arith.constant 0 : i32
    return %c0_i32, %c0_i32_0 : i32, i32
  }
  func.func @transform_5(%arg0: i32, %arg1: i32, %arg2: memref<2x2xi32, #tpu.memory_space<smem>>, %arg3: memref<2xi32, #tpu.memory_space<smem>>) -> (i32, i32) {
    %c0_i32 = arith.constant 0 : i32
    %c0_i32_0 = arith.constant 0 : i32
    %c0_i32_1 = arith.constant 0 : i32
    return %c0_i32, %c0_i32_0 : i32, i32
  }
  func.func @transform_6(%arg0: i32, %arg1: i32, %arg2: memref<2x2xi32, #tpu.memory_space<smem>>, %arg3: memref<2xi32, #tpu.memory_space<smem>>) -> (i32, i32) {
    %c0_i32 = arith.constant 0 : i32
    %c0_i32_0 = arith.constant 0 : i32
    return %arg0, %c0_i32 : i32, i32
  }
}

</mosaic_0001>

<llo_original>
// kernel: sage_conv.1
$region0: #{sage_conv.1}
  #allocation0 [shape = 'u32[]', space=smem, size = 0x4, offset = 0x4, fixed_abs, tag = 'smem constant byte address 0x4 - core index']
  #allocation1 [shape = 'u32[144,128]{1,0:T(1,128)}', space=vmem, size = 0x12000, scoped, tag = 'internal scratch']
  #allocation2 [shape = 'f32[128,128]{1,0:T(8,128)}', space=vmem, size = 0x10000, scoped, tag = 'scratch operand']
  #allocation3 [shape = 'f32[128,1]{1,0:T(8,128)}', space=vmem, size = 0x10000, scoped, tag = 'scratch operand']
  #allocation4 [shape = 's32[1]{0}', space=sflag, size = 0x4, scoped, tag = 'scoped memory for sage_conv.1']
  #allocation5 [shape = 'u8[1024]{0}', space=smem, size = 0x400, scoped, tag = 'prefetched SMEM operand 0']
  #allocation6 [shape = 'u8[512]{0}', space=smem, size = 0x200, scoped, tag = 'prefetched SMEM operand 1']
  %s0 = inlined_call_operand.vmem [shape: s32[2,2], index: 0, kind: input, shape index: {}]
  %s1 = inlined_call_operand.vmem [shape: s32[2], index: 1, kind: input, shape index: {}]
  %s2 = inlined_call_operand.vmem [shape: s8[256,512], index: 2, kind: input, shape index: {}]
  %s3 = inlined_call_operand.vmem [shape: bf16[512,128], index: 3, kind: input, shape index: {}]
  %s4 = inlined_call_operand.vmem [shape: bf16[256,128], index: 4, kind: input, shape index: {}]
  %s5 = inlined_call_operand.vmem [shape: bf16[128,128], index: 5, kind: input, shape index: {}]
  %s6 = inlined_call_operand.vmem [shape: bf16[128,128], index: 6, kind: input, shape index: {}]
  %s7 = inlined_call_operand.vmem [shape: f32[1,128], index: 7, kind: input, shape index: {}]
  %s8 = inlined_call_operand.vmem [shape: f32[256,128], index: 8, kind: output, shape index: {}]
  %s9 = sld [smem:[#allocation0]]
  $region92: #{sage_conv.1} parent=0
    _
  %s11 = ssub.s32 1, %s9
  %s12 = scalar_select 0, %s11, %s9
  %s13 = sshll.u32 %s0, 4
  %s14 = int_to_ptr.vmem [resolvable:$true] %s13
  %16 = dma.vmem_to_smem %s14, 32, [#allocation5], [#allocation4]
  %s17 = sshll.u32 %s1, 4
  %s18 = int_to_ptr.vmem [resolvable:$true] %s17
  %20 = dma.vmem_to_smem %s18, 16, [#allocation6], [#allocation4]
  %21 = dma.done [#allocation4], 48
  %22 = sfence
  $region1: #{sage_conv.1} parent=0
    #allocation7 [shape = 'u8[65536]{0}', space=vmem, size = 0x10000, scoped, tag = 'input window, operand 2']
    loop: start=0, step=1, limit=6
    $region2: #{sage_conv.1} parent=1 // loop_pre_header
      _
    $region3: #{sage_conv.1} parent=1 // loop_header
      %s24 = sphi 0, %s28
      %p25 = scmp.ge.s32.totalorder %s24, 6
      %s31 = sphi 0, %s43
      %s32 = sphi 0, %s39
      %s33 = sphi 0, %s31
      %s34 = sphi 0, %s32
      %s35 = sphi 0, %s33
      %s36 = sphi 0, %s34
      %s64 = sphi 0, %s66
      %s67 = sphi 0, %s64
      %s68 = sphi 0, %s67
      %s84 = sphi 0, %s68
      %s106 = sphi 0, %s108
      %s109 = sphi 0, %s106
      %s110 = sphi 0, %s109
      %s126 = sphi 0, %s110
      %s132 = sphi 0, %s134
      %s135 = sphi 0, %s132
      %s136 = sphi 0, %s135
      %s152 = sphi 0, %s136
      %s156 = sphi 0, %s156
      %s158 = sphi 0, %s156
      %s159 = sphi 0, %s158
      %s173 = sphi 0, %s159
      %s177 = sphi 0, %s177
      %s179 = sphi 0, %s177
      %s180 = sphi 0, %s179
      %s194 = sphi 0, %s180
      %s198 = sphi 0, %s198
      %s200 = sphi 0, %s198
      %s201 = sphi 0, %s200
      %s215 = sphi 0, %s201
      %s221 = sphi 0, %s223
      %s224 = sphi 0, %s221
      %s225 = sphi 0, %s224
      %s241 = sphi 0, %s225
    $region4: #{sage_conv.1} parent=1 // loop_header_branch
      %27 = sbr.rel (%p25) target = $region8
    $region5: #{sage_conv.1} parent=1 // loop_body
      %s29 = ssub.s32 %s24, 1
      %s30 = ssub.s32 %s24, 2
      %s37 = sadd.s32 1, %s32
      %p38 = scmp.ge.s32.totalorder %s37, 2
      %s39 = scalar_select %p38, 0, %s37
      %s40 = sadd.s32 1, %s31
      %s41 = scalar_select %p38, %s40, %s31
      %p42 = scmp.ge.s32.totalorder %s41, 2
      %s43 = scalar_select %p42, 0, %s41
      %s44 = sshra.s32 %s32, 7
      %s45 = sand.u32 %s32, 127
      %s46 = sadd.s32 %s44, %s31
      %s47 = smul.u32 %s46, 128
      %s48 = sshra.s32 %s32, 7
      %s49 = sand.u32 %s32, 127
      %s50 = sadd.s32 %s47, %s49
      %s51 = sld [smem:[#allocation5 + %s50]]
      %s52 = sshra.s32 %s39, 7
      %s53 = sand.u32 %s39, 127
      %s54 = sadd.s32 %s52, %s43
      %s55 = smul.u32 %s54, 128
      %s56 = sshra.s32 %s39, 7
      %s57 = sand.u32 %s39, 127
      %s58 = sadd.s32 %s55, %s57
      %s59 = sld [smem:[#allocation5 + %s58]]
      %s60 = ssub.s32 %s31, %s43
      %s61 = ssub.s32 %s51, %s59
      %s62 = sor.u32 %s60, %s61
      %p63 = scmp.eq.s32.totalorder %s62, 0
      %s65 = sadd.s32 %s64, 1
      %s66 = scalar_select %p63, %s64, %s65
      %p69 = pneg %p63
      %p70 = scmp.eq.s32.totalorder %s24, 3
      %p71 = por %p69, %p70
      %p72 = scmp.ne.s32.totalorder %s64, %s67
      %p73 = scmp.eq.s32.totalorder %s24, 0
      %p74 = por %p72, %p73
      %p75 = scmp.ne.s32.totalorder %s64, %s67
      %p76 = scmp.eq.s32.totalorder %s29, 3
      %p77 = por %p75, %p76
      %p78 = scmp.ne.s32.totalorder %s67, %s68
      %p79 = scmp.eq.s32.totalorder %s29, 0
      %p80 = por %p78, %p79
      %p81 = scmp.ne.s32.totalorder %s67, %s68
      %p82 = scmp.eq.s32.totalorder %s30, 3
      %p83 = por %p81, %p82
      %p85 = scmp.ne.s32.totalorder %s68, %s84
      %p86 = scmp.eq.s32.totalorder %s30, 0
      %p87 = por %p85, %p86
      %s88 = sshra.s32 %s32, 7
      %s89 = sand.u32 %s32, 127
      %s90 = sadd.s32 %s88, %s31
      %s91 = smul.u32 %s90, 128
      %s92 = sshra.s32 %s32, 7
      %s93 = sand.u32 %s32, 127
      %s94 = sadd.s32 %s91, %s93
      %s95 = sld [smem:[#allocation5 + %s94]]
      %s96 = sshra.s32 %s39, 7
      %s97 = sand.u32 %s39, 127
      %s98 = sadd.s32 %s96, %s43
      %s99 = smul.u32 %s98, 128
      %s100 = sshra.s32 %s39, 7
      %s101 = sand.u32 %s39, 127
      %s102 = sadd.s32 %s99, %s101
      %s103 = sld [smem:[#allocation5 + %s102]]
      %s104 = ssub.s32 %s95, %s103
      %p105 = scmp.eq.s32.totalorder %s104, 0
      %s107 = sadd.s32 %s106, 1
      %s108 = scalar_select %p105, %s106, %s107
      %p111 = pneg %p105
      %p112 = scmp.eq.s32.totalorder %s24, 3
      %p113 = por %p111, %p112
      %p114 = scmp.ne.s32.totalorder %s106, %s109
      %p115 = scmp.eq.s32.totalorder %s24, 0
      %p116 = por %p114, %p115
      %p117 = scmp.ne.s32.totalorder %s106, %s109
      %p118 = scmp.eq.s32.totalorder %s29, 3
      %p119 = por %p117, %p118
      %p120 = scmp.ne.s32.totalorder %s109, %s110
      %p121 = scmp.eq.s32.totalorder %s29, 0
      %p122 = por %p120, %p121
      %p123 = scmp.ne.s32.totalorder %s109, %s110
      %p124 = scmp.eq.s32.totalorder %s30, 3
      %p125 = por %p123, %p124
      %p127 = scmp.ne.s32.totalorder %s110, %s126
      %p128 = scmp.eq.s32.totalorder %s30, 0
      %p129 = por %p127, %p128
      %s130 = ssub.s32 %s31, %s43
      %p131 = scmp.eq.s32.totalorder %s130, 0
      %s133 = sadd.s32 %s132, 1
      %s134 = scalar_select %p131, %s132, %s133
      %p137 = pneg %p131
      %p138 = scmp.eq.s32.totalorder %s24, 3
      %p139 = por %p137, %p138
      %p140 = scmp.ne.s32.totalorder %s132, %s135
      %p141 = scmp.eq.s32.totalorder %s24, 0
      %p142 = por %p140, %p141
      %p143 = scmp.ne.s32.totalorder %s132, %s135
      %p144 = scmp.eq.s32.totalorder %s29, 3
      %p145 = por %p143, %p144
      %p146 = scmp.ne.s32.totalorder %s135, %s136
      %p147 = scmp.eq.s32.totalorder %s29, 0
      %p148 = por %p146, %p147
      %p149 = scmp.ne.s32.totalorder %s135, %s136
      %p150 = scmp.eq.s32.totalorder %s30, 3
      %p151 = por %p149, %p150
      %p153 = scmp.ne.s32.totalorder %s136, %s152
      %p154 = scmp.eq.s32.totalorder %s30, 0
      %p155 = por %p153, %p154
      %s157 = sadd.s32 %s156, 1
      %p160 = scmp.eq.s32.totalorder %s24, 3
      %p161 = scmp.ne.s32.totalorder %s156, %s158
      %p162 = scmp.eq.s32.totalorder %s24, 0
      %p163 = por %p161, %p162
      %p164 = scmp.ne.s32.totalorder %s156, %s158
      %p165 = scmp.eq.s32.totalorder %s29, 3
      %p166 = por %p164, %p165
      %p167 = scmp.ne.s32.totalorder %s158, %s159
      %p168 = scmp.eq.s32.totalorder %s29, 0
      %p169 = por %p167, %p168
      %p170 = scmp.ne.s32.totalorder %s158, %s159
      %p171 = scmp.eq.s32.totalorder %s30, 3
      %p172 = por %p170, %p171
      %p174 = scmp.ne.s32.totalorder %s159, %s173
      %p175 = scmp.eq.s32.totalorder %s30, 0
      %p176 = por %p174, %p175
      %s178 = sadd.s32 %s177, 1
      %p181 = scmp.eq.s32.totalorder %s24, 3
      %p182 = scmp.ne.s32.totalorder %s177, %s179
      %p183 = scmp.eq.s32.totalorder %s24, 0
      %p184 = por %p182, %p183
      %p185 = scmp.ne.s32.totalorder %s177, %s179
      %p186 = scmp.eq.s32.totalorder %s29, 3
      %p187 = por %p185, %p186
      %p188 = scmp.ne.s32.totalorder %s179, %s180
      %p189 = scmp.eq.s32.totalorder %s29, 0
      %p190 = por %p188, %p189
      %p191 = scmp.ne.s32.totalorder %s179, %s180
      %p192 = scmp.eq.s32.totalorder %s30, 3
      %p193 = por %p191, %p192
      %p195 = scmp.ne.s32.totalorder %s180, %s194
      %p196 = scmp.eq.s32.totalorder %s30, 0
      %p197 = por %p195, %p196
      %s199 = sadd.s32 %s198, 1
      %p202 = scmp.eq.s32.totalorder %s24, 3
      %p203 = scmp.ne.s32.totalorder %s198, %s200
      %p204 = scmp.eq.s32.totalorder %s24, 0
      %p205 = por %p203, %p204
      %p206 = scmp.ne.s32.totalorder %s198, %s200
      %p207 = scmp.eq.s32.totalorder %s29, 3
      %p208 = por %p206, %p207
      %p209 = scmp.ne.s32.totalorder %s200, %s201
      %p210 = scmp.eq.s32.totalorder %s29, 0
      %p211 = por %p209, %p210
      %p212 = scmp.ne.s32.totalorder %s200, %s201
      %p213 = scmp.eq.s32.totalorder %s30, 3
      %p214 = por %p212, %p213
      %p216 = scmp.ne.s32.totalorder %s201, %s215
      %p217 = scmp.eq.s32.totalorder %s30, 0
      %p218 = por %p216, %p217
      %s219 = ssub.s32 %s31, %s43
      %p220 = scmp.eq.s32.totalorder %s219, 0
      %s222 = sadd.s32 %s221, 1
      %s223 = scalar_select %p220, %s221, %s222
      %p226 = pneg %p220
      %p227 = scmp.eq.s32.totalorder %s24, 3
      %p228 = por %p226, %p227
      %p229 = scmp.ne.s32.totalorder %s221, %s224
      %p230 = scmp.eq.s32.totalorder %s24, 0
      %p231 = por %p229, %p230
      %p232 = scmp.ne.s32.totalorder %s221, %s224
      %p233 = scmp.eq.s32.totalorder %s29, 3
      %p234 = por %p232, %p233
      %p235 = scmp.ne.s32.totalorder %s224, %s225
      %p236 = scmp.eq.s32.totalorder %s29, 0
      %p237 = por %p235, %p236
      %p238 = scmp.ne.s32.totalorder %s224, %s225
      %p239 = scmp.eq.s32.totalorder %s30, 3
      %p240 = por %p238, %p239
      %p242 = scmp.ne.s32.totalorder %s225, %s241
      %p243 = scmp.eq.s32.totalorder %s30, 0
      %p244 = por %p242, %p243
      %p245 = scmp.le.s32.totalorder 1, %s24
      %p246 = scmp.lt.s32.totalorder %s24, 5
      %p247 = pnand %p245, %p246
      %p248 = pneg %p247
      // Predicated region
      $region9: #{sage_conv.1} parent=5 // pred_check
        _
      $region10: #{sage_conv.1} parent=5 // pred_check_branch
        %250 = sbr.rel (%p247) target = $region12
      $region11: #{sage_conv.1} parent=5 // pred_region
        %s251 = ssub.s32 %s24, 1
        // Predicated region
        $region13: #{sage_conv.1} parent=11 // pred_check
          %p252 = pneg %p169
        $region14: #{sage_conv.1} parent=11 // pred_check_branch
          %254 = sbr.rel (%p252) target = $region16
        $region15: #{sage_conv.1} parent=11 // pred_region
          _
        $region16: #{sage_conv.1} parent=11 // pred_fallthru
          _
        // Predicated region
        $region17: #{sage_conv.1} parent=11 // pred_check
          %p255 = pneg %p190
        $region18: #{sage_conv.1} parent=11 // pred_check_branch
          %257 = sbr.rel (%p255) target = $region20
        $region19: #{sage_conv.1} parent=11 // pred_region
          _
        $region20: #{sage_conv.1} parent=11 // pred_fallthru
          _
        // Predicated region
        $region21: #{sage_conv.1} parent=11 // pred_check
          %p258 = pneg %p211
        $region22: #{sage_conv.1} parent=11 // pred_check_branch
          %260 = sbr.rel (%p258) target = $region24
        $region23: #{sage_conv.1} parent=11 // pred_region
          _
        $region24: #{sage_conv.1} parent=11 // pred_fallthru
          _
      $region12: #{sage_conv.1} parent=5 // pred_fallthru
        _
      %p261 = scmp.lt.s32.totalorder %s24, 4
      // Predicated region
      $region25: #{sage_conv.1} parent=5 // pred_check
        %p262 = pneg %p261
      $region26: #{sage_conv.1} parent=5 // pred_check_branch
        %264 = sbr.rel (%p262) target = $region28
      $region27: #{sage_conv.1} parent=5 // pred_region
        // Predicated region
        $region29: #{sage_conv.1} parent=27 // pred_check
          %p265 = pneg %p74
        $region30: #{sage_conv.1} parent=27 // pred_check_branch
          %267 = sbr.rel (%p265) target = $region32
        $region31: #{sage_conv.1} parent=27 // pred_region
          %s268 = sand.u32 %s64, 1
          %s269 = sand.u32 %s64, 1
          %s270 = smul.addr %s269, 64
          %s271 = scalar_lea.vmem [#allocation7], %s270
          %s272 = sshra.s32 %s32, 7
          %s273 = sand.u32 %s32, 127
          %s274 = sadd.s32 %s272, %s31
          %s275 = smul.u32 %s274, 128
          %s276 = sshra.s32 %s32, 7
          %s277 = sand.u32 %s32, 127
          %s278 = sadd.s32 %s275, %s277
          %s279 = sld [smem:[#allocation5 + %s278]]
          %s280 = smul.u32 4, %s31
          %s281 = smul.u32 2, %s279
          %s282 = smul.addr %s280, 4
          %s283 = sadd.s32 %s281, %s282
          %s284 = smul.addr %s283, 8
          %s285 = scalar_lea.vmem %s2, %s284
          // Predicated region
          $region33: #{sage_conv.1} parent=31 // pred_check
            _
          $region34: #{sage_conv.1} parent=31 // pred_check_branch
            %287 = sbr.rel (0) target = $region36
          $region35: #{sage_conv.1} parent=31 // pred_region
            // Predicated region
            $region37: #{sage_conv.1} parent=35 // pred_check
              _
            $region38: #{sage_conv.1} parent=35 // pred_check_branch
              %289 = sbr.rel (0) target = $region40
            $region39: #{sage_conv.1} parent=35 // pred_region
              loop: start=0, step=1, limit=1
              $region41: #{sage_conv.1} parent=39 // loop_pre_header
                _
              $region42: #{sage_conv.1} parent=39 // loop_header
                %s291 = sphi 0, %s295
                %p292 = scmp.ge.s32.totalorder %s291, 1
                %s296 = sphi %s285, %s285
                %s297 = sphi %s271, %s271
              $region43: #{sage_conv.1} parent=39 // loop_header_branch
                %294 = sbr.rel (%p292) target = $region47
              $region44: #{sage_conv.1} parent=39 // loop_body
                %v298 = vld [vmem:[%s296] sm:$0xff]
                %299 = vst [vmem:[%s297] sm:$0xff] %v298
                %v300 = vld [vmem:[%s296 + $0x8] sm:$0xff]
                %301 = vst [vmem:[%s297 + $0x8] sm:$0xff] %v300
                %v302 = vld [vmem:[%s296 + $0x20] sm:$0xff]
                %303 = vst [vmem:[%s297 + $0x10] sm:$0xff] %v302
                %v304 = vld [vmem:[%s296 + $0x28] sm:$0xff]
                %305 = vst [vmem:[%s297 + $0x18] sm:$0xff] %v304
                %v306 = vld [vmem:[%s296 + $0x40] sm:$0xff]
                %307 = vst [vmem:[%s297 + $0x20] sm:$0xff] %v306
                %v308 = vld [vmem:[%s296 + $0x48] sm:$0xff]
                %309 = vst [vmem:[%s297 + $0x28] sm:$0xff] %v308
                %v310 = vld [vmem:[%s296 + $0x60] sm:$0xff]
                %311 = vst [vmem:[%s297 + $0x30] sm:$0xff] %v310
                %v312 = vld [vmem:[%s296 + $0x68] sm:$0xff]
                %313 = vst [vmem:[%s297 + $0x38] sm:$0xff] %v312
              $region45: #{sage_conv.1} parent=39 // loop_footer
                %s295 = sadd.s32 1, %s291
              $region46: #{sage_conv.1} parent=39 // loop_footer_branch
                %290 = sbr.rel target = $region42
              $region47: #{sage_conv.1} parent=39 // loop_exit
                _
            $region40: #{sage_conv.1} parent=35 // pred_fallthru
              _
            // Predicated region
            $region48: #{sage_conv.1} parent=35 // pred_check
              _
            $region49: #{sage_conv.1} parent=35 // pred_check_branch
              %315 = sbr.rel target = $region51
            $region50: #{sage_conv.1} parent=35 // pred_region
              _
            $region51: #{sage_conv.1} parent=35 // pred_fallthru
              _
          $region36: #{sage_conv.1} parent=31 // pred_fallthru
            _
          %316 = vnop
        $region32: #{sage_conv.1} parent=27 // pred_fallthru
          _
        // Predicated region
        $region52: #{sage_conv.1} parent=27 // pred_check
          %p317 = pneg %p116
        $region53: #{sage_conv.1} parent=27 // pred_check_branch
          %319 = sbr.rel (%p317) target = $region55
        $region54: #{sage_conv.1} parent=27 // pred_region
          %s320 = sshra.s32 %s32, 7
          %s321 = sand.u32 %s32, 127
          %s322 = sadd.s32 %s320, %s31
          %s323 = smul.u32 %s322, 128
          %s324 = sshra.s32 %s32, 7
          %s325 = sand.u32 %s32, 127
          %s326 = sadd.s32 %s323, %s325
          %s327 = sld [smem:[#allocation5 + %s326]]
          %s328 = smul.u32 32, %s327
          %p329 = scmp.lt.s32.totalorder %s328, 63
          %s330 = scalar_select %p329, %s328, 63
          %s331 = smul.addr %s330, 4
          %s332 = scalar_lea.vmem %s3, %s331
          %s333 = sshra.s32 %s32, 7
          %s334 = sand.u32 %s32, 127
          %s335 = sadd.s32 %s333, %s31
          %s336 = smul.u32 %s335, 128
          %s337 = sshra.s32 %s32, 7
          %s338 = sand.u32 %s32, 127
          %s339 = sadd.s32 %s336, %s338
          %s340 = sld [smem:[#allocation5 + %s339]]
          %s341 = smul.u32 32, %s340
        $region55: #{sage_conv.1} parent=27 // pred_fallthru
          _
        // Predicated region
        $region56: #{sage_conv.1} parent=27 // pred_check
          %p342 = pneg %p142
        $region57: #{sage_conv.1} parent=27 // pred_check_branch
          %344 = sbr.rel (%p342) target = $region59
        $region58: #{sage_conv.1} parent=27 // pred_region
          %s345 = smul.u32 16, %s31
          %p346 = scmp.lt.s32.totalorder %s345, 31
          %s347 = scalar_select %p346, %s345, 31
          %s348 = smul.addr %s347, 4
          %s349 = scalar_lea.vmem %s4, %s348
          %s350 = smul.u32 16, %s31
        $region59: #{sage_conv.1} parent=27 // pred_fallthru
          _
      $region28: #{sage_conv.1} parent=5 // pred_fallthru
        _
      %p351 = scmp.le.s32.totalorder 1, %s24
      %p352 = scmp.lt.s32.totalorder %s24, 5
      %p353 = pnand %p351, %p352
      %p354 = pneg %p353
      // Predicated region
      $region60: #{sage_conv.1} parent=5 // pred_check
        _
      $region61: #{sage_conv.1} parent=5 // pred_check_branch
        %356 = sbr.rel (%p353) target = $region63
      $region62: #{sage_conv.1} parent=5 // pred_region
        %s357 = ssub.s32 %s24, 1
        %s358 = sand.u32 %s67, 1
        %s359 = sand.u32 %s67, 1
        %s360 = smul.addr %s359, 64
        %s361 = scalar_lea.vmem [#allocation7], %s360
        // Predicated region
        $region64: #{sage_conv.1} parent=62 // pred_check
          %p362 = pneg %p80
        $region65: #{sage_conv.1} parent=62 // pred_check_branch
          %364 = sbr.rel (%p362) target = $region67
        $region66: #{sage_conv.1} parent=62 // pred_region
          _
        $region67: #{sage_conv.1} parent=62 // pred_fallthru
          _
        %s365 = sand.u32 %s67, 1
        %s366 = sand.u32 %s67, 1
        %s367 = smul.addr %s366, 64
        %s368 = scalar_lea.vmem [#allocation7], %s367
        %p369 = pneg %p80
        %p370 = pneg %p77
        %s371 = sshra.s32 %s34, 7
        %s372 = sand.u32 %s34, 127
        %s373 = sadd.s32 %s371, %s33
        %s374 = smul.u32 %s373, 128
        %s375 = sshra.s32 %s34, 7
        %s376 = sand.u32 %s34, 127
        %s377 = sadd.s32 %s374, %s376
        %s378 = sld [smem:[#allocation5 + %s377]]
        %s379 = smul.u32 32, %s378
        %p380 = scmp.lt.s32.totalorder %s379, 63
        %s381 = scalar_select %p380, %s379, 63
        %s382 = smul.addr %s381, 4
        %s383 = scalar_lea.vmem %s3, %s382
        %p384 = pneg %p122
        %p385 = pneg %p119
        %s386 = smul.u32 16, %s33
        %p387 = scmp.lt.s32.totalorder %s386, 31
        %s388 = scalar_select %p387, %s386, 31
        %s389 = smul.addr %s388, 4
        %s390 = scalar_lea.vmem %s4, %s389
        %p391 = pneg %p148
        %p392 = pneg %p145
        %p393 = pneg %p169
        %p394 = pneg %p166
        %p395 = pneg %p190
        %p396 = pneg %p187
        %p397 = pneg %p211
        %p398 = pneg %p208
        %p399 = pneg %p237
        %p400 = pneg %p234
        %s401 = smul.u32 16, %s33
        %p402 = scmp.lt.s32.totalorder %s401, 31
        %s403 = scalar_select %p402, %s401, 31
        %s404 = smul.addr %s403, 8
        %s405 = scalar_lea.vmem %s8, %s404
        %s406 = sshra.s32 %s34, 7
        %s407 = sand.u32 %s34, 127
        %s408 = sadd.s32 %s406, %s33
        %s409 = smul.u32 %s408, 128
        %s410 = sshra.s32 %s34, 7
        %s411 = sand.u32 %s34, 127
        %s412 = sadd.s32 %s409, %s411
        %s413 = sld [smem:[#allocation5 + %s412]]
        %s414 = smul.u32 4, %s33
        %s415 = smul.u32 2, %s413
        %s416 = sshra.s32 %s34, 7
        %s417 = sand.u32 %s34, 127
        %s418 = sadd.s32 %s416, %s33
        %s419 = smul.u32 %s418, 128
        %s420 = sshra.s32 %s34, 7
        %s421 = sand.u32 %s34, 127
        %s422 = sadd.s32 %s419, %s421
        %s423 = sld [smem:[#allocation5 + %s422]]
        %s424 = smul.u32 32, %s423
        %p425 = scmp.lt.s32.totalorder %s424, 63
        %s426 = scalar_select %p425, %s424, 63
        %s427 = smul.addr %s426, 4
        %s428 = scalar_lea.vmem %s3, %s427
        %s429 = sshra.s32 %s34, 7
        %s430 = sand.u32 %s34, 127
        %s431 = sadd.s32 %s429, %s33
        %s432 = smul.u32 %s431, 128
        %s433 = sshra.s32 %s34, 7
        %s434 = sand.u32 %s34, 127
        %s435 = sadd.s32 %s432, %s434
        %s436 = sld [smem:[#allocation5 + %s435]]
        %s437 = smul.u32 32, %s436
        %s438 = smul.u32 16, %s33
        %p439 = scmp.lt.s32.totalorder %s438, 31
        %s440 = scalar_select %p439, %s438, 31
        %s441 = smul.addr %s440, 4
        %s442 = scalar_lea.vmem %s4, %s441
        %s443 = smul.u32 16, %s33
        %s444 = smul.u32 16, %s33
        %p445 = scmp.lt.s32.totalorder %s444, 31
        %s446 = scalar_select %p445, %s444, 31
        %s447 = smul.addr %s446, 8
        %s448 = scalar_lea.vmem %s8, %s447
        %s449 = smul.u32 16, %s33
        %p451 = scmp.eq.s32.totalorder %s34, 0
        // Predicated region
        $region68: #{sage_conv.1} parent=62 // pred_check
          %p452 = pneg %p451
        $region69: #{sage_conv.1} parent=62 // pred_check_branch
          %454 = sbr.rel (%p452) target = $region71
        $region70: #{sage_conv.1} parent=62 // pred_region
          %455 = vst [vmem:[#allocation2] sm:$0xff] 0.0
          %456 = vst [vmem:[#allocation2 + $0x8] sm:$0xff] 0.0
          %457 = vst [vmem:[#allocation2 + $0x10] sm:$0xff] 0.0
          %458 = vst [vmem:[#allocation2 + $0x18] sm:$0xff] 0.0
          %459 = vst [vmem:[#allocation2 + $0x20] sm:$0xff] 0.0
          %460 = vst [vmem:[#allocation2 + $0x28] sm:$0xff] 0.0
          %461 = vst [vmem:[#allocation2 + $0x30] sm:$0xff] 0.0
          %462 = vst [vmem:[#allocation2 + $0x38] sm:$0xff] 0.0
          %463 = vst [vmem:[#allocation2 + $0x40] sm:$0xff] 0.0
          %464 = vst [vmem:[#allocation2 + $0x48] sm:$0xff] 0.0
          %465 = vst [vmem:[#allocation2 + $0x50] sm:$0xff] 0.0
          %466 = vst [vmem:[#allocation2 + $0x58] sm:$0xff] 0.0
          %467 = vst [vmem:[#allocation2 + $0x60] sm:$0xff] 0.0
          %468 = vst [vmem:[#allocation2 + $0x68] sm:$0xff] 0.0
          %469 = vst [vmem:[#allocation2 + $0x70] sm:$0xff] 0.0
          %470 = vst [vmem:[#allocation2 + $0x78] sm:$0xff] 0.0
          %vm471 = vcmask 7168
          %472 = vst.msk [vmem:[#allocation3] sm:$0xff] %vm471, 0.0
          %473 = vst.msk [vmem:[#allocation3 + $0x8] sm:$0xff] %vm471, 0.0
          %474 = vst.msk [vmem:[#allocation3 + $0x10] sm:$0xff] %vm471, 0.0
          %475 = vst.msk [vmem:[#allocation3 + $0x18] sm:$0xff] %vm471, 0.0
          %476 = vst.msk [vmem:[#allocation3 + $0x20] sm:$0xff] %vm471, 0.0
          %477 = vst.msk [vmem:[#allocation3 + $0x28] sm:$0xff] %vm471, 0.0
          %478 = vst.msk [vmem:[#allocation3 + $0x30] sm:$0xff] %vm471, 0.0
          %479 = vst.msk [vmem:[#allocation3 + $0x38] sm:$0xff] %vm471, 0.0
          %480 = vst.msk [vmem:[#allocation3 + $0x40] sm:$0xff] %vm471, 0.0
          %481 = vst.msk [vmem:[#allocation3 + $0x48] sm:$0xff] %vm471, 0.0
          %482 = vst.msk [vmem:[#allocation3 + $0x50] sm:$0xff] %vm471, 0.0
          %483 = vst.msk [vmem:[#allocation3 + $0x58] sm:$0xff] %vm471, 0.0
          %484 = vst.msk [vmem:[#allocation3 + $0x60] sm:$0xff] %vm471, 0.0
          %485 = vst.msk [vmem:[#allocation3 + $0x68] sm:$0xff] %vm471, 0.0
          %486 = vst.msk [vmem:[#allocation3 + $0x70] sm:$0xff] %vm471, 0.0
          %487 = vst.msk [vmem:[#allocation3 + $0x78] sm:$0xff] %vm471, 0.0
          %v488 = vld [vmem:[%s442] sm:$0xf]
          %v489 = vld [vmem:[%s442 + $0x4] sm:$0xf]
          %v490 = vld [vmem:[%s442 + $0x8] sm:$0xf]
          %v491 = vld [vmem:[%s442 + $0xc] sm:$0xf]
          %v492 = vld [vmem:[%s442 + $0x10] sm:$0xf]
          %v493 = vld [vmem:[%s442 + $0x14] sm:$0xf]
          %v494 = vld [vmem:[%s442 + $0x18] sm:$0xf]
          %v495 = vld [vmem:[%s442 + $0x1c] sm:$0xf]
          %v496 = vld [vmem:[%s442 + $0x20] sm:$0xf]
          %v497 = vld [vmem:[%s442 + $0x24] sm:$0xf]
          %v498 = vld [vmem:[%s442 + $0x28] sm:$0xf]
          %v499 = vld [vmem:[%s442 + $0x2c] sm:$0xf]
          %v500 = vld [vmem:[%s442 + $0x30] sm:$0xf]
          %v501 = vld [vmem:[%s442 + $0x34] sm:$0xf]
          %v502 = vld [vmem:[%s442 + $0x38] sm:$0xf]
          %v503 = vld [vmem:[%s442 + $0x3c] sm:$0xf]
          %v504 = vld [vmem:[%s5] sm:$0xf]
          %v505 = vld [vmem:[%s5 + $0x4] sm:$0xf]
          %v506 = vld [vmem:[%s5 + $0x8] sm:$0xf]
          %v507 = vld [vmem:[%s5 + $0xc] sm:$0xf]
          %v508 = vld [vmem:[%s5 + $0x10] sm:$0xf]
          %v509 = vld [vmem:[%s5 + $0x14] sm:$0xf]
          %v510 = vld [vmem:[%s5 + $0x18] sm:$0xf]
          %v511 = vld [vmem:[%s5 + $0x1c] sm:$0xf]
          %v512 = vld [vmem:[%s5 + $0x20] sm:$0xf]
          %v513 = vld [vmem:[%s5 + $0x24] sm:$0xf]
          %v514 = vld [vmem:[%s5 + $0x28] sm:$0xf]
          %v515 = vld [vmem:[%s5 + $0x2c] sm:$0xf]
          %v516 = vld [vmem:[%s5 + $0x30] sm:$0xf]
          %v517 = vld [vmem:[%s5 + $0x34] sm:$0xf]
          %v518 = vld [vmem:[%s5 + $0x38] sm:$0xf]
          %v519 = vld [vmem:[%s5 + $0x3c] sm:$0xf]
          %v520 = vld [vmem:[%s7] sm:$0x1]
          %v522 = vlaneseq
          %v523 = vshrl.u32 %v522, 7
          %v524 = vsub.s32 0, %v523
          %v525 = vrot.slane %v520, %v524
          %v543 = vunpack.c.l.b16 %v488
          %v544 = vunpack.c.l.b16 %v489
          %v545 = vunpack.c.l.b16 %v490
          %v546 = vunpack.c.l.b16 %v491
          %v547 = vunpack.c.l.b16 %v492
          %v548 = vunpack.c.l.b16 %v493
          %v549 = vunpack.c.l.b16 %v494
          %v550 = vunpack.c.l.b16 %v495
          %v551 = vunpack.c.l.b16 %v496
          %v552 = vunpack.c.l.b16 %v497
          %v553 = vunpack.c.l.b16 %v498
          %v554 = vunpack.c.l.b16 %v499
          %v555 = vunpack.c.l.b16 %v500
          %v556 = vunpack.c.l.b16 %v501
          %v557 = vunpack.c.l.b16 %v502
          %v558 = vunpack.c.l.b16 %v503
          %v559 = vpack.c.b16 %v544, %v543
          %v560 = vpack.c.b16 %v546, %v545
          %v561 = vpack.c.b16 %v548, %v547
          %v562 = vpack.c.b16 %v550, %v549
          %v563 = vpack.c.b16 %v552, %v551
          %v564 = vpack.c.b16 %v554, %v553
          %v565 = vpack.c.b16 %v556, %v555
          %v566 = vpack.c.b16 %v558, %v557
          %v591 = vunpack.c.l.b16 %v504
          %v592 = vunpack.c.l.b16 %v505
          %v593 = vunpack.c.l.b16 %v506
          %v594 = vunpack.c.l.b16 %v507
          %v595 = vunpack.c.l.b16 %v508
          %v596 = vunpack.c.l.b16 %v509
          %v597 = vunpack.c.l.b16 %v510
          %v598 = vunpack.c.l.b16 %v511
          %v599 = vunpack.c.l.b16 %v512
          %v600 = vunpack.c.l.b16 %v513
          %v601 = vunpack.c.l.b16 %v514
          %v602 = vunpack.c.l.b16 %v515
          %v603 = vunpack.c.l.b16 %v516
          %v604 = vunpack.c.l.b16 %v517
          %v605 = vunpack.c.l.b16 %v518
          %v606 = vunpack.c.l.b16 %v519
          %v607 = vpack.c.b16 %v592, %v591
          %v608 = vpack.c.b16 %v594, %v593
          %v609 = vpack.c.b16 %v596, %v595
          %v610 = vpack.c.b16 %v598, %v597
          %v611 = vpack.c.b16 %v600, %v599
          %v612 = vpack.c.b16 %v602, %v601
          %v613 = vpack.c.b16 %v604, %v603
          %v614 = vpack.c.b16 %v606, %v605
          %623 = vmatprep.subr.bf16.mxu0 0
          %624 = vmatpush1.bf16.msra.mxu0 %v607
          %625 = vmatprep.subr.bf16.mxu0 0
          %626 = vmatpush1.bf16.msra.mxu0 %v608
          %627 = vmatprep.subr.bf16.mxu0 0
          %628 = vmatpush1.bf16.msra.mxu0 %v609
          %629 = vmatprep.subr.bf16.mxu0 0
          %630 = vmatpush1.bf16.msra.mxu0 %v610
          %631 = vmatprep.subr.bf16.mxu0 0
          %632 = vmatpush1.bf16.msra.mxu0 %v611
          %633 = vmatprep.subr.bf16.mxu0 0
          %634 = vmatpush1.bf16.msra.mxu0 %v612
          %635 = vmatprep.subr.bf16.mxu0 0
          %636 = vmatpush1.bf16.msra.mxu0 %v613
          %637 = vmatprep.subr.bf16.mxu0 0
          %638 = vmatpush1.bf16.msra.mxu0 %v614
          %639 = vmatprep.subr.bf16.mxu0 0
          %640 = vmatpush1.bf16.msra.mxu0 0
          %641 = vmatprep.subr.bf16.mxu0 0
          %642 = vmatpush1.bf16.msra.mxu0 0
          %643 = vmatprep.subr.bf16.mxu0 0
          %644 = vmatpush1.bf16.msra.mxu0 0
          %645 = vmatprep.subr.bf16.mxu0 0
          %646 = vmatpush1.bf16.msra.mxu0 0
          %647 = vmatprep.subr.bf16.mxu0 0
          %648 = vmatpush1.bf16.msra.mxu0 0
          %649 = vmatprep.subr.bf16.mxu0 0
          %650 = vmatpush1.bf16.msra.mxu0 0
          %651 = vmatprep.subr.bf16.mxu0 0
          %652 = vmatpush1.bf16.msra.mxu0 0
          %653 = vmatprep.subr.bf16.mxu0 0
          %654 = vmatpush1.bf16.msra.mxu0 0
          %655 = vmatprep.mubr.bf16.mxu0 0
          %656 = vmatmul.mubr.bf16.gmra.mrb[0].mxu0 %v559
          %v657 = vpop.f32.mrb[0].mxu0
          %v658 = vadd.f32 %v525, %v657
          %v659 = vpop.f32.mrb[0].mxu0
          %v660 = vpop.f32.mrb[0].mxu0
          %v661 = vadd.f32 %v525, %v660
          %v662 = vpop.f32.mrb[0].mxu0
          %663 = vmatprep.mubr.bf16.mxu0 0
          %664 = vmatmul.mubr.bf16.gmra.mrb[0].mxu0 %v560
          %v665 = vpop.f32.mrb[0].mxu0
          %v666 = vadd.f32 %v525, %v665
          %v667 = vpop.f32.mrb[0].mxu0
          %v668 = vpop.f32.mrb[0].mxu0
          %v669 = vadd.f32 %v525, %v668
          %v670 = vpop.f32.mrb[0].mxu0
          %671 = vmatprep.mubr.bf16.mxu0 0
          %672 = vmatmul.mubr.bf16.gmra.mrb[0].mxu0 %v561
          %v673 = vpop.f32.mrb[0].mxu0
          %v674 = vadd.f32 %v525, %v673
          %v675 = vpop.f32.mrb[0].mxu0
          %v676 = vpop.f32.mrb[0].mxu0
          %v677 = vadd.f32 %v525, %v676
          %v678 = vpop.f32.mrb[0].mxu0
          %679 = vmatprep.mubr.bf16.mxu0 0
          %680 = vmatmul.mubr.bf16.gmra.mrb[0].mxu0 %v562
          %v681 = vpop.f32.mrb[0].mxu0
          %v682 = vadd.f32 %v525, %v681
          %v683 = vpop.f32.mrb[0].mxu0
          %v684 = vpop.f32.mrb[0].mxu0
          %v685 = vadd.f32 %v525, %v684
          %v686 = vpop.f32.mrb[0].mxu0
          %687 = vmatprep.mubr.bf16.mxu0 0
          %688 = vmatmul.mubr.bf16.gmra.mrb[0].mxu0 %v563
          %v689 = vpop.f32.mrb[0].mxu0
          %v690 = vadd.f32 %v525, %v689
          %v691 = vpop.f32.mrb[0].mxu0
          %v692 = vpop.f32.mrb[0].mxu0
          %v693 = vadd.f32 %v525, %v692
          %v694 = vpop.f32.mrb[0].mxu0
          %695 = vmatprep.mubr.bf16.mxu0 0
          %696 = vmatmul.mubr.bf16.gmra.mrb[0].mxu0 %v564
          %v697 = vpop.f32.mrb[0].mxu0
          %v698 = vadd.f32 %v525, %v697
          %v699 = vpop.f32.mrb[0].mxu0
          %v700 = vpop.f32.mrb[0].mxu0
          %v701 = vadd.f32 %v525, %v700
          %v702 = vpop.f32.mrb[0].mxu0
          %703 = vmatprep.mubr.bf16.mxu0 0
          %704 = vmatmul.mubr.bf16.gmra.mrb[0].mxu0 %v565
          %v705 = vpop.f32.mrb[0].mxu0
          %v706 = vadd.f32 %v525, %v705
          %v707 = vpop.f32.mrb[0].mxu0
          %v708 = vpop.f32.mrb[0].mxu0
          %v709 = vadd.f32 %v525, %v708
          %v710 = vpop.f32.mrb[0].mxu0
          %711 = vmatprep.mubr.bf16.mxu0 0
          %712 = vmatmul.mubr.bf16.gmra.mrb[0].mxu0 %v566
          %v713 = vpop.f32.mrb[0].mxu0
          %v714 = vadd.f32 %v525, %v713
          %v715 = vpop.f32.mrb[0].mxu0
          %v716 = vpop.f32.mrb[0].mxu0
          %v717 = vadd.f32 %v525, %v716
          %v718 = vpop.f32.mrb[0].mxu0
          %719 = vdwg.mxu0
          %720 = vst [vmem:[%s448] sm:$0xff] %v658
          %721 = vst [vmem:[%s448 + $0x8] sm:$0xff] %v661
          %722 = vst [vmem:[%s448 + $0x10] sm:$0xff] %v666
          %723 = vst [vmem:[%s448 + $0x18] sm:$0xff] %v669
          %724 = vst [vmem:[%s448 + $0x20] sm:$0xff] %v674
          %725 = vst [vmem:[%s448 + $0x28] sm:$0xff] %v677
          %726 = vst [vmem:[%s448 + $0x30] sm:$0xff] %v682
          %727 = vst [vmem:[%s448 + $0x38] sm:$0xff] %v685
          %728 = vst [vmem:[%s448 + $0x40] sm:$0xff] %v690
          %729 = vst [vmem:[%s448 + $0x48] sm:$0xff] %v693
          %730 = vst [vmem:[%s448 + $0x50] sm:$0xff] %v698
          %731 = vst [vmem:[%s448 + $0x58] sm:$0xff] %v701
          %732 = vst [vmem:[%s448 + $0x60] sm:$0xff] %v706
          %733 = vst [vmem:[%s448 + $0x68] sm:$0xff] %v709
          %734 = vst [vmem:[%s448 + $0x70] sm:$0xff] %v714
          %735 = vst [vmem:[%s448 + $0x78] sm:$0xff] %v717
        $region71: #{sage_conv.1} parent=62 // pred_fallthru
          _
        %s736 = sld [smem:[#allocation6 + %s33]]
        %p737 = scmp.lt.s32.totalorder %s34, %s736
        // Predicated region
        $region72: #{sage_conv.1} parent=62 // pred_check
          %p738 = pneg %p737
        $region73: #{sage_conv.1} parent=62 // pred_check_branch
          %740 = sbr.rel (%p738) target = $region75
        $region74: #{sage_conv.1} parent=62 // pred_region
          %v741 = vld [vmem:[%s361] sm:$0xff]
          %v742 = vld [vmem:[%s361 + $0x8] sm:$0xff]
          %v743 = vld [vmem:[%s361 + $0x10] sm:$0xff]
          %v744 = vld [vmem:[%s361 + $0x18] sm:$0xff]
          %v745 = vld [vmem:[%s361 + $0x20] sm:$0xff]
          %v746 = vld [vmem:[%s361 + $0x28] sm:$0xff]
          %v747 = vld [vmem:[%s361 + $0x30] sm:$0xff]
          %v748 = vld [vmem:[%s361 + $0x38] sm:$0xff]
          %v749 = vunpack.c.l.s8.bf16 %v741
          %v750 = vunpack.c.l.s8.bf16 %v742
          %v751 = vunpack.c.h.s8.bf16 %v741
          %v752 = vunpack.c.h.s8.bf16 %v742
          %v753 = vunpack.c.l.s8.bf16 %v743
          %v754 = vunpack.c.l.s8.bf16 %v744
          %v755 = vunpack.c.h.s8.bf16 %v743
          %v756 = vunpack.c.h.s8.bf16 %v744
          %v757 = vunpack.c.l.s8.bf16 %v745
          %v758 = vunpack.c.l.s8.bf16 %v746
          %v759 = vunpack.c.h.s8.bf16 %v745
          %v760 = vunpack.c.h.s8.bf16 %v746
          %v761 = vunpack.c.l.s8.bf16 %v747
          %v762 = vunpack.c.l.s8.bf16 %v748
          %v763 = vunpack.c.h.s8.bf16 %v747
          %v764 = vunpack.c.h.s8.bf16 %v748
          %v765 = vld [vmem:[#allocation2] sm:$0xff]
          %v766 = vld [vmem:[#allocation2 + $0x8] sm:$0xff]
          %v767 = vld [vmem:[#allocation2 + $0x10] sm:$0xff]
          %v768 = vld [vmem:[#allocation2 + $0x18] sm:$0xff]
          %v769 = vld [vmem:[#allocation2 + $0x20] sm:$0xff]
          %v770 = vld [vmem:[#allocation2 + $0x28] sm:$0xff]
          %v771 = vld [vmem:[#allocation2 + $0x30] sm:$0xff]
          %v772 = vld [vmem:[#allocation2 + $0x38] sm:$0xff]
          %v773 = vld [vmem:[#allocation2 + $0x40] sm:$0xff]
          %v774 = vld [vmem:[#allocation2 + $0x48] sm:$0xff]
          %v775 = vld [vmem:[#allocation2 + $0x50] sm:$0xff]
          %v776 = vld [vmem:[#allocation2 + $0x58] sm:$0xff]
          %v777 = vld [vmem:[#allocation2 + $0x60] sm:$0xff]
          %v778 = vld [vmem:[#allocation2 + $0x68] sm:$0xff]
          %v779 = vld [vmem:[#allocation2 + $0x70] sm:$0xff]
          %v780 = vld [vmem:[#allocation2 + $0x78] sm:$0xff]
          %v781 = vld [vmem:[%s428] sm:$0xf]
          %v782 = vld [vmem:[%s428 + $0x4] sm:$0xf]
          %v783 = vld [vmem:[%s428 + $0x8] sm:$0xf]
          %v784 = vld [vmem:[%s428 + $0xc] sm:$0xf]
          %v785 = vld [vmem:[%s428 + $0x10] sm:$0xf]
          %v786 = vld [vmem:[%s428 + $0x14] sm:$0xf]
          %v787 = vld [vmem:[%s428 + $0x18] sm:$0xf]
          %v788 = vld [vmem:[%s428 + $0x1c] sm:$0xf]
          %v789 = vld [vmem:[%s428 + $0x20] sm:$0xf]
          %v790 = vld [vmem:[%s428 + $0x24] sm:$0xf]
          %v791 = vld [vmem:[%s428 + $0x28] sm:$0xf]
          %v792 = vld [vmem:[%s428 + $0x2c] sm:$0xf]
          %v793 = vld [vmem:[%s428 + $0x30] sm:$0xf]
          %v794 = vld [vmem:[%s428 + $0x34] sm:$0xf]
          %v795 = vld [vmem:[%s428 + $0x38] sm:$0xf]
          %v796 = vld [vmem:[%s428 + $0x3c] sm:$0xf]
          %v797 = vld [vmem:[%s428 + $0x40] sm:$0xf]
          %v798 = vld [vmem:[%s428 + $0x44] sm:$0xf]
          %v799 = vld [vmem:[%s428 + $0x48] sm:$0xf]
          %v800 = vld [vmem:[%s428 + $0x4c] sm:$0xf]
          %v801 = vld [vmem:[%s428 + $0x50] sm:$0xf]
          %v802 = vld [vmem:[%s428 + $0x54] sm:$0xf]
          %v803 = vld [vmem:[%s428 + $0x58] sm:$0xf]
          %v804 = vld [vmem:[%s428 + $0x5c] sm:$0xf]
          %v805 = vld [vmem:[%s428 + $0x60] sm:$0xf]
          %v806 = vld [vmem:[%s428 + $0x64] sm:$0xf]
          %v807 = vld [vmem:[%s428 + $0x68] sm:$0xf]
          %v808 = vld [vmem:[%s428 + $0x6c] sm:$0xf]
          %v809 = vld [vmem:[%s428 + $0x70] sm:$0xf]
          %v810 = vld [vmem:[%s428 + $0x74] sm:$0xf]
          %v811 = vld [vmem:[%s428 + $0x78] sm:$0xf]
          %v812 = vld [vmem:[%s428 + $0x7c] sm:$0xf]
          %v845 = vunpack.c.l.b16 %v781
          %v846 = vunpack.c.l.b16 %v782
          %v847 = vunpack.c.l.b16 %v783
          %v848 = vunpack.c.l.b16 %v784
          %v849 = vunpack.c.l.b16 %v785
          %v850 = vunpack.c.l.b16 %v786
          %v851 = vunpack.c.l.b16 %v787
          %v852 = vunpack.c.l.b16 %v788
          %v853 = vunpack.c.l.b16 %v789
          %v854 = vunpack.c.l.b16 %v790
          %v855 = vunpack.c.l.b16 %v791
          %v856 = vunpack.c.l.b16 %v792
          %v857 = vunpack.c.l.b16 %v793
          %v858 = vunpack.c.l.b16 %v794
          %v859 = vunpack.c.l.b16 %v795
          %v860 = vunpack.c.l.b16 %v796
          %v861 = vunpack.c.l.b16 %v797
          %v862 = vunpack.c.l.b16 %v798
          %v863 = vunpack.c.l.b16 %v799
          %v864 = vunpack.c.l.b16 %v800
          %v865 = vunpack.c.l.b16 %v801
          %v866 = vunpack.c.l.b16 %v802
          %v867 = vunpack.c.l.b16 %v803
          %v868 = vunpack.c.l.b16 %v804
          %v869 = vunpack.c.l.b16 %v805
          %v870 = vunpack.c.l.b16 %v806
          %v871 = vunpack.c.l.b16 %v807
          %v872 = vunpack.c.l.b16 %v808
          %v873 = vunpack.c.l.b16 %v809
          %v874 = vunpack.c.l.b16 %v810
          %v875 = vunpack.c.l.b16 %v811
          %v876 = vunpack.c.l.b16 %v812
          %v877 = vpack.c.b16 %v846, %v845
          %v878 = vpack.c.b16 %v848, %v847
          %v879 = vpack.c.b16 %v850, %v849
          %v880 = vpack.c.b16 %v852, %v851
          %v881 = vpack.c.b16 %v854, %v853
          %v882 = vpack.c.b16 %v856, %v855
          %v883 = vpack.c.b16 %v858, %v857
          %v884 = vpack.c.b16 %v860, %v859
          %v885 = vpack.c.b16 %v862, %v861
          %v886 = vpack.c.b16 %v864, %v863
          %v887 = vpack.c.b16 %v866, %v865
          %v888 = vpack.c.b16 %v868, %v867
          %v889 = vpack.c.b16 %v870, %v869
          %v890 = vpack.c.b16 %v872, %v871
          %v891 = vpack.c.b16 %v874, %v873
          %v892 = vpack.c.b16 %v876, %v875
          %909 = vmatprep.subr.bf16.mxu0 0
          %910 = vmatpush1.bf16.msra.mxu0 %v877
          %911 = vmatprep.subr.bf16.mxu0 0
          %912 = vmatpush1.bf16.msra.mxu0 %v878
          %913 = vmatprep.subr.bf16.mxu0 0
          %914 = vmatpush1.bf16.msra.mxu0 %v879
          %915 = vmatprep.subr.bf16.mxu0 0
          %916 = vmatpush1.bf16.msra.mxu0 %v880
          %917 = vmatprep.subr.bf16.mxu0 0
          %918 = vmatpush1.bf16.msra.mxu0 %v881
          %919 = vmatprep.subr.bf16.mxu0 0
          %920 = vmatpush1.bf16.msra.mxu0 %v882
          %921 = vmatprep.subr.bf16.mxu0 0
          %922 = vmatpush1.bf16.msra.mxu0 %v883
          %923 = vmatprep.subr.bf16.mxu0 0
          %924 = vmatpush1.bf16.msra.mxu0 %v884
          %925 = vmatprep.subr.bf16.mxu0 0
          %926 = vmatpush1.bf16.msra.mxu0 %v885
          %927 = vmatprep.subr.bf16.mxu0 0
          %928 = vmatpush1.bf16.msra.mxu0 %v886
          %929 = vmatprep.subr.bf16.mxu0 0
          %930 = vmatpush1.bf16.msra.mxu0 %v887
          %931 = vmatprep.subr.bf16.mxu0 0
          %932 = vmatpush1.bf16.msra.mxu0 %v888
          %933 = vmatprep.subr.bf16.mxu0 0
          %934 = vmatpush1.bf16.msra.mxu0 %v889
          %935 = vmatprep.subr.bf16.mxu0 0
          %936 = vmatpush1.bf16.msra.mxu0 %v890
          %937 = vmatprep.subr.bf16.mxu0 0
          %938 = vmatpush1.bf16.msra.mxu0 %v891
          %939 = vmatprep.subr.bf16.mxu0 0
          %940 = vmatpush1.bf16.msra.mxu0 %v892
          %941 = vmatprep.mubr.bf16.mxu0 %v750
          %942 = vmatmul.mubr.bf16.gmra.mrb[0].mxu0 %v749
          %v943 = vpop.f32.mrb[0].mxu0
          %v944 = vadd.f32 0.0, %v943
          %v945 = vpop.f32.mrb[0].mxu0
          %v946 = vpop.f32.mrb[0].mxu0
          %v947 = vadd.f32 0.0, %v946
          %v948 = vpop.f32.mrb[0].mxu0
          %949 = vmatprep.mubr.bf16.mxu0 %v752
          %950 = vmatmul.mubr.bf16.gmra.mrb[0].mxu0 %v751
          %v951 = vpop.f32.mrb[0].mxu0
          %v952 = vadd.f32 0.0, %v951
          %v953 = vpop.f32.mrb[0].mxu0
          %v954 = vpop.f32.mrb[0].mxu0
          %v955 = vadd.f32 0.0, %v954
          %v956 = vpop.f32.mrb[0].mxu0
          %957 = vmatprep.mubr.bf16.mxu0 %v754
          %958 = vmatmul.mubr.bf16.gmra.mrb[0].mxu0 %v753
          %v959 = vpop.f32.mrb[0].mxu0
          %v960 = vadd.f32 0.0, %v959
          %v961 = vpop.f32.mrb[0].mxu0
          %v962 = vpop.f32.mrb[0].mxu0
          %v963 = vadd.f32 0.0, %v962
          %v964 = vpop.f32.mrb[0].mxu0
          %965 = vmatprep.mubr.bf16.mxu0 %v756
          %966 = vmatmul.mubr.bf16.gmra.mrb[0].mxu0 %v755
          %v967 = vpop.f32.mrb[0].mxu0
          %v968 = vadd.f32 0.0, %v967
          %v969 = vpop.f32.mrb[0].mxu0
          %v970 = vpop.f32.mrb[0].mxu0
          %v971 = vadd.f32 0.0, %v970
          %v972 = vpop.f32.mrb[0].mxu0
          %973 = vmatprep.mubr.bf16.mxu0 %v758
          %974 = vmatmul.mubr.bf16.gmra.mrb[0].mxu0 %v757
          %v975 = vpop.f32.mrb[0].mxu0
          %v976 = vadd.f32 0.0, %v975
          %v977 = vpop.f32.mrb[0].mxu0
          %v978 = vpop.f32.mrb[0].mxu0
          %v979 = vadd.f32 0.0, %v978
          %v980 = vpop.f32.mrb[0].mxu0
          %981 = vmatprep.mubr.bf16.mxu0 %v760
          %982 = vmatmul.mubr.bf16.gmra.mrb[0].mxu0 %v759
          %v983 = vpop.f32.mrb[0].mxu0
          %v984 = vadd.f32 0.0, %v983
          %v985 = vpop.f32.mrb[0].mxu0
          %v986 = vpop.f32.mrb[0].mxu0
          %v987 = vadd.f32 0.0, %v986
          %v988 = vpop.f32.mrb[0].mxu0
          %989 = vmatprep.mubr.bf16.mxu0 %v762
          %990 = vmatmul.mubr.bf16.gmra.mrb[0].mxu0 %v761
          %v991 = vpop.f32.mrb[0].mxu0
          %v992 = vadd.f32 0.0, %v991
          %v993 = vpop.f32.mrb[0].mxu0
          %v994 = vpop.f32.mrb[0].mxu0
          %v995 = vadd.f32 0.0, %v994
          %v996 = vpop.f32.mrb[0].mxu0
          %997 = vmatprep.mubr.bf16.mxu0 %v764
          %998 = vmatmul.mubr.bf16.gmra.mrb[0].mxu0 %v763
          %v999 = vpop.f32.mrb[0].mxu0
          %v1000 = vadd.f32 0.0, %v999
          %v1001 = vpop.f32.mrb[0].mxu0
          %v1002 = vpop.f32.mrb[0].mxu0
          %v1003 = vadd.f32 0.0, %v1002
          %v1004 = vpop.f32.mrb[0].mxu0
          %1005 = vdwg.mxu0
          %v1006 = vadd.f32 %v765, %v944
          %v1007 = vadd.f32 %v766, %v947
          %v1008 = vadd.f32 %v767, %v952
          %v1009 = vadd.f32 %v768, %v955
          %v1010 = vadd.f32 %v769, %v960
          %v1011 = vadd.f32 %v770, %v963
          %v1012 = vadd.f32 %v771, %v968
          %v1013 = vadd.f32 %v772, %v971
          %v1014 = vadd.f32 %v773, %v976
          %v1015 = vadd.f32 %v774, %v979
          %v1016 = vadd.f32 %v775, %v984
          %v1017 = vadd.f32 %v776, %v987
          %v1018 = vadd.f32 %v777, %v992
          %v1019 = vadd.f32 %v778, %v995
          %v1020 = vadd.f32 %v779, %v1000
          %v1021 = vadd.f32 %v780, %v1003
          %1022 = vst [vmem:[#allocation2] sm:$0xff] %v1006
          %1023 = vst [vmem:[#allocation2 + $0x8] sm:$0xff] %v1007
          %1024 = vst [vmem:[#allocation2 + $0x10] sm:$0xff] %v1008
          %1025 = vst [vmem:[#allocation2 + $0x18] sm:$0xff] %v1009
          %1026 = vst [vmem:[#allocation2 + $0x20] sm:$0xff] %v1010
          %1027 = vst [vmem:[#allocation2 + $0x28] sm:$0xff] %v1011
          %1028 = vst [vmem:[#allocation2 + $0x30] sm:$0xff] %v1012
          %1029 = vst [vmem:[#allocation2 + $0x38] sm:$0xff] %v1013
          %1030 = vst [vmem:[#allocation2 + $0x40] sm:$0xff] %v1014
          %1031 = vst [vmem:[#allocation2 + $0x48] sm:$0xff] %v1015
          %1032 = vst [vmem:[#allocation2 + $0x50] sm:$0xff] %v1016
          %1033 = vst [vmem:[#allocation2 + $0x58] sm:$0xff] %v1017
          %1034 = vst [vmem:[#allocation2 + $0x60] sm:$0xff] %v1018
          %1035 = vst [vmem:[#allocation2 + $0x68] sm:$0xff] %v1019
          %1036 = vst [vmem:[#allocation2 + $0x70] sm:$0xff] %v1020
          %1037 = vst [vmem:[#allocation2 + $0x78] sm:$0xff] %v1021
          %v1038 = vld [vmem:[#allocation3] sm:$0xff]
          %v1039 = vld [vmem:[#allocation3 + $0x8] sm:$0xff]
          %v1040 = vld [vmem:[#allocation3 + $0x10] sm:$0xff]
          %v1041 = vld [vmem:[#allocation3 + $0x18] sm:$0xff]
          %v1042 = vld [vmem:[#allocation3 + $0x20] sm:$0xff]
          %v1043 = vld [vmem:[#allocation3 + $0x28] sm:$0xff]
          %v1044 = vld [vmem:[#allocation3 + $0x30] sm:$0xff]
          %v1045 = vld [vmem:[#allocation3 + $0x38] sm:$0xff]
          %v1046 = vld [vmem:[#allocation3 + $0x40] sm:$0xff]
          %v1047 = vld [vmem:[#allocation3 + $0x48] sm:$0xff]
          %v1048 = vld [vmem:[#allocation3 + $0x50] sm:$0xff]
          %v1049 = vld [vmem:[#allocation3 + $0x58] sm:$0xff]
          %v1050 = vld [vmem:[#allocation3 + $0x60] sm:$0xff]
          %v1051 = vld [vmem:[#allocation3 + $0x68] sm:$0xff]
          %v1052 = vld [vmem:[#allocation3 + $0x70] sm:$0xff]
          %v1053 = vld [vmem:[#allocation3 + $0x78] sm:$0xff]
          %v1054 = vld [vmem:[%s361] sm:$0xff]
          %v1055 = vld [vmem:[%s361 + $0x8] sm:$0xff]
          %v1056 = vld [vmem:[%s361 + $0x10] sm:$0xff]
          %v1057 = vld [vmem:[%s361 + $0x18] sm:$0xff]
          %v1058 = vld [vmem:[%s361 + $0x20] sm:$0xff]
          %v1059 = vld [vmem:[%s361 + $0x28] sm:$0xff]
          %v1060 = vld [vmem:[%s361 + $0x30] sm:$0xff]
          %v1061 = vld [vmem:[%s361 + $0x38] sm:$0xff]
          %v1062 = vunpack.c.0.s8 %v1054
          %v1063 = vunpack.c.0.s8 %v1055
          %v1064 = vunpack.c.1.s8 %v1054
          %v1065 = vunpack.c.1.s8 %v1055
          %v1066 = vunpack.c.2.s8 %v1054
          %v1067 = vunpack.c.2.s8 %v1055
          %v1068 = vunpack.c.3.s8 %v1054
          %v1069 = vunpack.c.3.s8 %v1055
          %v1070 = vunpack.c.0.s8 %v1056
          %v1071 = vunpack.c.0.s8 %v1057
          %v1072 = vunpack.c.1.s8 %v1056
          %v1073 = vunpack.c.1.s8 %v1057
          %v1074 = vunpack.c.2.s8 %v1056
          %v1075 = vunpack.c.2.s8 %v1057
          %v1076 = vunpack.c.3.s8 %v1056
          %v1077 = vunpack.c.3.s8 %v1057
          %v1078 = vunpack.c.0.s8 %v1058
          %v1079 = vunpack.c.0.s8 %v1059
          %v1080 = vunpack.c.1.s8 %v1058
          %v1081 = vunpack.c.1.s8 %v1059
          %v1082 = vunpack.c.2.s8 %v1058
          %v1083 = vunpack.c.2.s8 %v1059
          %v1084 = vunpack.c.3.s8 %v1058
          %v1085 = vunpack.c.3.s8 %v1059
          %v1086 = vunpack.c.0.s8 %v1060
          %v1087 = vunpack.c.0.s8 %v1061
          %v1088 = vunpack.c.1.s8 %v1060
          %v1089 = vunpack.c.1.s8 %v1061
          %v1090 = vunpack.c.2.s8 %v1060
          %v1091 = vunpack.c.2.s8 %v1061
          %v1092 = vunpack.c.3.s8 %v1060
          %v1093 = vunpack.c.3.s8 %v1061
          %v1094 = vcvt.s32.f32 %v1062
          %v1095 = vcvt.s32.f32 %v1063
          %v1096 = vcvt.s32.f32 %v1064
          %v1097 = vcvt.s32.f32 %v1065
          %v1098 = vcvt.s32.f32 %v1066
          %v1099 = vcvt.s32.f32 %v1067
          %v1100 = vcvt.s32.f32 %v1068
          %v1101 = vcvt.s32.f32 %v1069
          %v1102 = vcvt.s32.f32 %v1070
          %v1103 = vcvt.s32.f32 %v1071
          %v1104 = vcvt.s32.f32 %v1072
          %v1105 = vcvt.s32.f32 %v1073
          %v1106 = vcvt.s32.f32 %v1074
          %v1107 = vcvt.s32.f32 %v1075
          %v1108 = vcvt.s32.f32 %v1076
          %v1109 = vcvt.s32.f32 %v1077
          %v1110 = vcvt.s32.f32 %v1078
          %v1111 = vcvt.s32.f32 %v1079
          %v1112 = vcvt.s32.f32 %v1080
          %v1113 = vcvt.s32.f32 %v1081
          %v1114 = vcvt.s32.f32 %v1082
          %v1115 = vcvt.s32.f32 %v1083
          %v1116 = vcvt.s32.f32 %v1084
          %v1117 = vcvt.s32.f32 %v1085
          %v1118 = vcvt.s32.f32 %v1086
          %v1119 = vcvt.s32.f32 %v1087
          %v1120 = vcvt.s32.f32 %v1088
          %v1121 = vcvt.s32.f32 %v1089
          %v1122 = vcvt.s32.f32 %v1090
          %v1123 = vcvt.s32.f32 %v1091
          %v1124 = vcvt.s32.f32 %v1092
          %v1125 = vcvt.s32.f32 %v1093
          %v1126 = vadd.f32 %v1094, %v1095
          %1127 = vadd.xlane.f32.xlu0 %v1126
          %v1128 = vpop.xlane.xlu0 %1127
          %v1129 = vadd.f32 %v1096, %v1097
          %1130 = vadd.xlane.f32.xlu0 %v1129
          %v1131 = vpop.xlane.xlu0 %1130
          %v1132 = vadd.f32 %v1098, %v1099
          %1133 = vadd.xlane.f32.xlu0 %v1132
          %v1134 = vpop.xlane.xlu0 %1133
          %v1135 = vadd.f32 %v1100, %v1101
          %1136 = vadd.xlane.f32.xlu0 %v1135
          %v1137 = vpop.xlane.xlu0 %1136
          %v1138 = vadd.f32 %v1102, %v1103
          %1139 = vadd.xlane.f32.xlu0 %v1138
          %v1140 = vpop.xlane.xlu0 %1139
          %v1141 = vadd.f32 %v1104, %v1105
          %1142 = vadd.xlane.f32.xlu0 %v1141
          %v1143 = vpop.xlane.xlu0 %1142
          %v1144 = vadd.f32 %v1106, %v1107
          %1145 = vadd.xlane.f32.xlu0 %v1144
          %v1146 = vpop.xlane.xlu0 %1145
          %v1147 = vadd.f32 %v1108, %v1109
          %1148 = vadd.xlane.f32.xlu0 %v1147
          %v1149 = vpop.xlane.xlu0 %1148
          %v1150 = vadd.f32 %v1110, %v1111
          %1151 = vadd.xlane.f32.xlu0 %v1150
          %v1152 = vpop.xlane.xlu0 %1151
          %v1153 = vadd.f32 %v1112, %v1113
          %1154 = vadd.xlane.f32.xlu0 %v1153
          %v1155 = vpop.xlane.xlu0 %1154
          %v1156 = vadd.f32 %v1114, %v1115
          %1157 = vadd.xlane.f32.xlu0 %v1156
          %v1158 = vpop.xlane.xlu0 %1157
          %v1159 = vadd.f32 %v1116, %v1117
          %1160 = vadd.xlane.f32.xlu0 %v1159
          %v1161 = vpop.xlane.xlu0 %1160
          %v1162 = vadd.f32 %v1118, %v1119
          %1163 = vadd.xlane.f32.xlu0 %v1162
          %v1164 = vpop.xlane.xlu0 %1163
          %v1165 = vadd.f32 %v1120, %v1121
          %1166 = vadd.xlane.f32.xlu0 %v1165
          %v1167 = vpop.xlane.xlu0 %1166
          %v1168 = vadd.f32 %v1122, %v1123
          %1169 = vadd.xlane.f32.xlu0 %v1168
          %v1170 = vpop.xlane.xlu0 %1169
          %v1171 = vadd.f32 %v1124, %v1125
          %1172 = vadd.xlane.f32.xlu0 %v1171
          %v1173 = vpop.xlane.xlu0 %1172
          %v1174 = vadd.f32 %v1038, %v1128
          %v1175 = vadd.f32 %v1039, %v1131
          %v1176 = vadd.f32 %v1040, %v1134
          %v1177 = vadd.f32 %v1041, %v1137
          %v1178 = vadd.f32 %v1042, %v1140
          %v1179 = vadd.f32 %v1043, %v1143
          %v1180 = vadd.f32 %v1044, %v1146
          %v1181 = vadd.f32 %v1045, %v1149
          %v1182 = vadd.f32 %v1046, %v1152
          %v1183 = vadd.f32 %v1047, %v1155
          %v1184 = vadd.f32 %v1048, %v1158
          %v1185 = vadd.f32 %v1049, %v1161
          %v1186 = vadd.f32 %v1050, %v1164
          %v1187 = vadd.f32 %v1051, %v1167
          %v1188 = vadd.f32 %v1052, %v1170
          %v1189 = vadd.f32 %v1053, %v1173
          %vm1190 = vcmask 7168
          %1191 = vst.msk [vmem:[#allocation3] sm:$0xff] %vm1190, %v1174
          %1192 = vst.msk [vmem:[#allocation3 + $0x8] sm:$0xff] %vm1190, %v1175
          %1193 = vst.msk [vmem:[#allocation3 + $0x10] sm:$0xff] %vm1190, %v1176
          %1194 = vst.msk [vmem:[#allocation3 + $0x18] sm:$0xff] %vm1190, %v1177
          %1195 = vst.msk [vmem:[#allocation3 + $0x20] sm:$0xff] %vm1190, %v1178
          %1196 = vst.msk [vmem:[#allocation3 + $0x28] sm:$0xff] %vm1190, %v1179
          %1197 = vst.msk [vmem:[#allocation3 + $0x30] sm:$0xff] %vm1190, %v1180
          %1198 = vst.msk [vmem:[#allocation3 + $0x38] sm:$0xff] %vm1190, %v1181
          %1199 = vst.msk [vmem:[#allocation3 + $0x40] sm:$0xff] %vm1190, %v1182
          %1200 = vst.msk [vmem:[#allocation3 + $0x48] sm:$0xff] %vm1190, %v1183
          %1201 = vst.msk [vmem:[#allocation3 + $0x50] sm:$0xff] %vm1190, %v1184
          %1202 = vst.msk [vmem:[#allocation3 + $0x58] sm:$0xff] %vm1190, %v1185
          %1203 = vst.msk [vmem:[#allocation3 + $0x60] sm:$0xff] %vm1190, %v1186
          %1204 = vst.msk [vmem:[#allocation3 + $0x68] sm:$0xff] %vm1190, %v1187
          %1205 = vst.msk [vmem:[#allocation3 + $0x70] sm:$0xff] %vm1190, %v1188
          %1206 = vst.msk [vmem:[#allocation3 + $0x78] sm:$0xff] %vm1190, %v1189
        $region75: #{sage_conv.1} parent=62 // pred_fallthru
          _
        %p1207 = scmp.eq.s32.totalorder %s34, 1
        // Predicated region
        $region76: #{sage_conv.1} parent=62 // pred_check
          %p1208 = pneg %p1207
        $region77: #{sage_conv.1} parent=62 // pred_check_branch
          %1210 = sbr.rel (%p1208) target = $region79
        $region78: #{sage_conv.1} parent=62 // pred_region
          %v1211 = vld [vmem:[#allocation3] sm:$0xff]
          %v1212 = vld [vmem:[#allocation3 + $0x8] sm:$0xff]
          %v1213 = vld [vmem:[#allocation3 + $0x10] sm:$0xff]
          %v1214 = vld [vmem:[#allocation3 + $0x18] sm:$0xff]
          %v1215 = vld [vmem:[#allocation3 + $0x20] sm:$0xff]
          %v1216 = vld [vmem:[#allocation3 + $0x28] sm:$0xff]
          %v1217 = vld [vmem:[#allocation3 + $0x30] sm:$0xff]
          %v1218 = vld [vmem:[#allocation3 + $0x38] sm:$0xff]
          %v1219 = vld [vmem:[#allocation3 + $0x40] sm:$0xff]
          %v1220 = vld [vmem:[#allocation3 + $0x48] sm:$0xff]
          %v1221 = vld [vmem:[#allocation3 + $0x50] sm:$0xff]
          %v1222 = vld [vmem:[#allocation3 + $0x58] sm:$0xff]
          %v1223 = vld [vmem:[#allocation3 + $0x60] sm:$0xff]
          %v1224 = vld [vmem:[#allocation3 + $0x68] sm:$0xff]
          %v1225 = vld [vmem:[#allocation3 + $0x70] sm:$0xff]
          %v1226 = vld [vmem:[#allocation3 + $0x78] sm:$0xff]
          %v1227 = vrcp.pop %v1211
          %v1228 = vrcp.pop %v1212
          %v1229 = vrcp.pop %v1213
          %v1230 = vrcp.pop %v1214
          %v1231 = vrcp.pop %v1215
          %v1232 = vrcp.pop %v1216
          %v1233 = vrcp.pop %v1217
          %v1234 = vrcp.pop %v1218
          %v1235 = vrcp.pop %v1219
          %v1236 = vrcp.pop %v1220
          %v1237 = vrcp.pop %v1221
          %v1238 = vrcp.pop %v1222
          %v1239 = vrcp.pop %v1223
          %v1240 = vrcp.pop %v1224
          %v1241 = vrcp.pop %v1225
          %v1242 = vrcp.pop %v1226
          %vm1243 = vcmp.gt.f32.partialorder %v1211, 0.0
          %vm1244 = vcmp.gt.f32.partialorder %v1212, 0.0
          %vm1245 = vcmp.gt.f32.partialorder %v1213, 0.0
          %vm1246 = vcmp.gt.f32.partialorder %v1214, 0.0
          %vm1247 = vcmp.gt.f32.partialorder %v1215, 0.0
          %vm1248 = vcmp.gt.f32.partialorder %v1216, 0.0
          %vm1249 = vcmp.gt.f32.partialorder %v1217, 0.0
          %vm1250 = vcmp.gt.f32.partialorder %v1218, 0.0
          %vm1251 = vcmp.gt.f32.partialorder %v1219, 0.0
          %vm1252 = vcmp.gt.f32.partialorder %v1220, 0.0
          %vm1253 = vcmp.gt.f32.partialorder %v1221, 0.0
          %vm1254 = vcmp.gt.f32.partialorder %v1222, 0.0
          %vm1255 = vcmp.gt.f32.partialorder %v1223, 0.0
          %vm1256 = vcmp.gt.f32.partialorder %v1224, 0.0
          %vm1257 = vcmp.gt.f32.partialorder %v1225, 0.0
          %vm1258 = vcmp.gt.f32.partialorder %v1226, 0.0
          %v1259 = vsel %vm1243, %v1227, 0.0
          %v1260 = vsel %vm1244, %v1228, 0.0
          %v1261 = vsel %vm1245, %v1229, 0.0
          %v1262 = vsel %vm1246, %v1230, 0.0
          %v1263 = vsel %vm1247, %v1231, 0.0
          %v1264 = vsel %vm1248, %v1232, 0.0
          %v1265 = vsel %vm1249, %v1233, 0.0
          %v1266 = vsel %vm1250, %v1234, 0.0
          %v1267 = vsel %vm1251, %v1235, 0.0
          %v1268 = vsel %vm1252, %v1236, 0.0
          %v1269 = vsel %vm1253, %v1237, 0.0
          %v1270 = vsel %vm1254, %v1238, 0.0
          %v1271 = vsel %vm1255, %v1239, 0.0
          %v1272 = vsel %vm1256, %v1240, 0.0
          %v1273 = vsel %vm1257, %v1241, 0.0
          %v1274 = vsel %vm1258, %v1242, 0.0
          %v1275 = vld [vmem:[#allocation2] sm:$0xff]
          %v1276 = vld [vmem:[#allocation2 + $0x8] sm:$0xff]
          %v1277 = vld [vmem:[#allocation2 + $0x10] sm:$0xff]
          %v1278 = vld [vmem:[#allocation2 + $0x18] sm:$0xff]
          %v1279 = vld [vmem:[#allocation2 + $0x20] sm:$0xff]
          %v1280 = vld [vmem:[#allocation2 + $0x28] sm:$0xff]
          %v1281 = vld [vmem:[#allocation2 + $0x30] sm:$0xff]
          %v1282 = vld [vmem:[#allocation2 + $0x38] sm:$0xff]
          %v1283 = vld [vmem:[#allocation2 + $0x40] sm:$0xff]
          %v1284 = vld [vmem:[#allocation2 + $0x48] sm:$0xff]
          %v1285 = vld [vmem:[#allocation2 + $0x50] sm:$0xff]
          %v1286 = vld [vmem:[#allocation2 + $0x58] sm:$0xff]
          %v1287 = vld [vmem:[#allocation2 + $0x60] sm:$0xff]
          %v1288 = vld [vmem:[#allocation2 + $0x68] sm:$0xff]
          %v1289 = vld [vmem:[#allocation2 + $0x70] sm:$0xff]
          %v1290 = vld [vmem:[#allocation2 + $0x78] sm:$0xff]
          %v1291 = vpack.c.bf16 %v1276, %v1275
          %v1292 = vpack.c.bf16 %v1278, %v1277
          %v1293 = vpack.c.bf16 %v1280, %v1279
          %v1294 = vpack.c.bf16 %v1282, %v1281
          %v1295 = vpack.c.bf16 %v1284, %v1283
          %v1296 = vpack.c.bf16 %v1286, %v1285
          %v1297 = vpack.c.bf16 %v1288, %v1287
          %v1298 = vpack.c.bf16 %v1290, %v1289
          %v1299 = vld [vmem:[%s6] sm:$0xf]
          %v1300 = vld [vmem:[%s6 + $0x4] sm:$0xf]
          %v1301 = vld [vmem:[%s6 + $0x8] sm:$0xf]
          %v1302 = vld [vmem:[%s6 + $0xc] sm:$0xf]
          %v1303 = vld [vmem:[%s6 + $0x10] sm:$0xf]
          %v1304 = vld [vmem:[%s6 + $0x14] sm:$0xf]
          %v1305 = vld [vmem:[%s6 + $0x18] sm:$0xf]
          %v1306 = vld [vmem:[%s6 + $0x1c] sm:$0xf]
          %v1307 = vld [vmem:[%s6 + $0x20] sm:$0xf]
          %v1308 = vld [vmem:[%s6 + $0x24] sm:$0xf]
          %v1309 = vld [vmem:[%s6 + $0x28] sm:$0xf]
          %v1310 = vld [vmem:[%s6 + $0x2c] sm:$0xf]
          %v1311 = vld [vmem:[%s6 + $0x30] sm:$0xf]
          %v1312 = vld [vmem:[%s6 + $0x34] sm:$0xf]
          %v1313 = vld [vmem:[%s6 + $0x38] sm:$0xf]
          %v1314 = vld [vmem:[%s6 + $0x3c] sm:$0xf]
          %v1331 = vunpack.c.l.b16 %v1299
          %v1332 = vunpack.c.l.b16 %v1300
          %v1333 = vunpack.c.l.b16 %v1301
          %v1334 = vunpack.c.l.b16 %v1302
          %v1335 = vunpack.c.l.b16 %v1303
          %v1336 = vunpack.c.l.b16 %v1304
          %v1337 = vunpack.c.l.b16 %v1305
          %v1338 = vunpack.c.l.b16 %v1306
          %v1339 = vunpack.c.l.b16 %v1307
          %v1340 = vunpack.c.l.b16 %v1308
          %v1341 = vunpack.c.l.b16 %v1309
          %v1342 = vunpack.c.l.b16 %v1310
          %v1343 = vunpack.c.l.b16 %v1311
          %v1344 = vunpack.c.l.b16 %v1312
          %v1345 = vunpack.c.l.b16 %v1313
          %v1346 = vunpack.c.l.b16 %v1314
          %v1347 = vpack.c.b16 %v1332, %v1331
          %v1348 = vpack.c.b16 %v1334, %v1333
          %v1349 = vpack.c.b16 %v1336, %v1335
          %v1350 = vpack.c.b16 %v1338, %v1337
          %v1351 = vpack.c.b16 %v1340, %v1339
          %v1352 = vpack.c.b16 %v1342, %v1341
          %v1353 = vpack.c.b16 %v1344, %v1343
          %v1354 = vpack.c.b16 %v1346, %v1345
          %1363 = vmatprep.subr.bf16.mxu0 0
          %1364 = vmatpush1.bf16.msra.mxu0 %v1347
          %1365 = vmatprep.subr.bf16.mxu0 0
          %1366 = vmatpush1.bf16.msra.mxu0 %v1348
          %1367 = vmatprep.subr.bf16.mxu0 0
          %1368 = vmatpush1.bf16.msra.mxu0 %v1349
          %1369 = vmatprep.subr.bf16.mxu0 0
          %1370 = vmatpush1.bf16.msra.mxu0 %v1350
          %1371 = vmatprep.subr.bf16.mxu0 0
          %1372 = vmatpush1.bf16.msra.mxu0 %v1351
          %1373 = vmatprep.subr.bf16.mxu0 0
          %1374 = vmatpush1.bf16.msra.mxu0 %v1352
          %1375 = vmatprep.subr.bf16.mxu0 0
          %1376 = vmatpush1.bf16.msra.mxu0 %v1353
          %1377 = vmatprep.subr.bf16.mxu0 0
          %1378 = vmatpush1.bf16.msra.mxu0 %v1354
          %1379 = vmatprep.subr.bf16.mxu0 0
          %1380 = vmatpush1.bf16.msra.mxu0 0
          %1381 = vmatprep.subr.bf16.mxu0 0
          %1382 = vmatpush1.bf16.msra.mxu0 0
          %1383 = vmatprep.subr.bf16.mxu0 0
          %1384 = vmatpush1.bf16.msra.mxu0 0
          %1385 = vmatprep.subr.bf16.mxu0 0
          %1386 = vmatpush1.bf16.msra.mxu0 0
          %1387 = vmatprep.subr.bf16.mxu0 0
          %1388 = vmatpush1.bf16.msra.mxu0 0
          %1389 = vmatprep.subr.bf16.mxu0 0
          %1390 = vmatpush1.bf16.msra.mxu0 0
          %1391 = vmatprep.subr.bf16.mxu0 0
          %1392 = vmatpush1.bf16.msra.mxu0 0
          %1393 = vmatprep.subr.bf16.mxu0 0
          %1394 = vmatpush1.bf16.msra.mxu0 0
          %1395 = vmatprep.mubr.bf16.mxu0 0
          %1396 = vmatmul.mubr.bf16.gmra.mrb[0].mxu0 %v1291
          %v1397 = vpop.f32.mrb[0].mxu0
          %v1398 = vadd.f32 0.0, %v1397
          %v1399 = vpop.f32.mrb[0].mxu0
          %v1400 = vpop.f32.mrb[0].mxu0
          %v1401 = vadd.f32 0.0, %v1400
          %v1402 = vpop.f32.mrb[0].mxu0
          %1403 = vmatprep.mubr.bf16.mxu0 0
          %1404 = vmatmul.mubr.bf16.gmra.mrb[0].mxu0 %v1292
          %v1405 = vpop.f32.mrb[0].mxu0
          %v1406 = vadd.f32 0.0, %v1405
          %v1407 = vpop.f32.mrb[0].mxu0
          %v1408 = vpop.f32.mrb[0].mxu0
          %v1409 = vadd.f32 0.0, %v1408
          %v1410 = vpop.f32.mrb[0].mxu0
          %1411 = vmatprep.mubr.bf16.mxu0 0
          %1412 = vmatmul.mubr.bf16.gmra.mrb[0].mxu0 %v1293
          %v1413 = vpop.f32.mrb[0].mxu0
          %v1414 = vadd.f32 0.0, %v1413
          %v1415 = vpop.f32.mrb[0].mxu0
          %v1416 = vpop.f32.mrb[0].mxu0
          %v1417 = vadd.f32 0.0, %v1416
          %v1418 = vpop.f32.mrb[0].mxu0
          %1419 = vmatprep.mubr.bf16.mxu0 0
          %1420 = vmatmul.mubr.bf16.gmra.mrb[0].mxu0 %v1294
          %v1421 = vpop.f32.mrb[0].mxu0
          %v1422 = vadd.f32 0.0, %v1421
          %v1423 = vpop.f32.mrb[0].mxu0
          %v1424 = vpop.f32.mrb[0].mxu0
          %v1425 = vadd.f32 0.0, %v1424
          %v1426 = vpop.f32.mrb[0].mxu0
          %1427 = vmatprep.mubr.bf16.mxu0 0
          %1428 = vmatmul.mubr.bf16.gmra.mrb[0].mxu0 %v1295
          %v1429 = vpop.f32.mrb[0].mxu0
          %v1430 = vadd.f32 0.0, %v1429
          %v1431 = vpop.f32.mrb[0].mxu0
          %v1432 = vpop.f32.mrb[0].mxu0
          %v1433 = vadd.f32 0.0, %v1432
          %v1434 = vpop.f32.mrb[0].mxu0
          %1435 = vmatprep.mubr.bf16.mxu0 0
          %1436 = vmatmul.mubr.bf16.gmra.mrb[0].mxu0 %v1296
          %v1437 = vpop.f32.mrb[0].mxu0
          %v1438 = vadd.f32 0.0, %v1437
          %v1439 = vpop.f32.mrb[0].mxu0
          %v1440 = vpop.f32.mrb[0].mxu0
          %v1441 = vadd.f32 0.0, %v1440
          %v1442 = vpop.f32.mrb[0].mxu0
          %1443 = vmatprep.mubr.bf16.mxu0 0
          %1444 = vmatmul.mubr.bf16.gmra.mrb[0].mxu0 %v1297
          %v1445 = vpop.f32.mrb[0].mxu0
          %v1446 = vadd.f32 0.0, %v1445
          %v1447 = vpop.f32.mrb[0].mxu0
          %v1448 = vpop.f32.mrb[0].mxu0
          %v1449 = vadd.f32 0.0, %v1448
          %v1450 = vpop.f32.mrb[0].mxu0
          %1451 = vmatprep.mubr.bf16.mxu0 0
          %1452 = vmatmul.mubr.bf16.gmra.mrb[0].mxu0 %v1298
          %v1453 = vpop.f32.mrb[0].mxu0
          %v1454 = vadd.f32 0.0, %v1453
          %v1455 = vpop.f32.mrb[0].mxu0
          %v1456 = vpop.f32.mrb[0].mxu0
          %v1457 = vadd.f32 0.0, %v1456
          %v1458 = vpop.f32.mrb[0].mxu0
          %1459 = vdwg.mxu0
          %v1460 = vld [vmem:[%s448] sm:$0xff]
          %v1461 = vld [vmem:[%s448 + $0x8] sm:$0xff]
          %v1462 = vld [vmem:[%s448 + $0x10] sm:$0xff]
          %v1463 = vld [vmem:[%s448 + $0x18] sm:$0xff]
          %v1464 = vld [vmem:[%s448 + $0x20] sm:$0xff]
          %v1465 = vld [vmem:[%s448 + $0x28] sm:$0xff]
          %v1466 = vld [vmem:[%s448 + $0x30] sm:$0xff]
          %v1467 = vld [vmem:[%s448 + $0x38] sm:$0xff]
          %v1468 = vld [vmem:[%s448 + $0x40] sm:$0xff]
          %v1469 = vld [vmem:[%s448 + $0x48] sm:$0xff]
          %v1470 = vld [vmem:[%s448 + $0x50] sm:$0xff]
          %v1471 = vld [vmem:[%s448 + $0x58] sm:$0xff]
          %v1472 = vld [vmem:[%s448 + $0x60] sm:$0xff]
          %v1473 = vld [vmem:[%s448 + $0x68] sm:$0xff]
          %v1474 = vld [vmem:[%s448 + $0x70] sm:$0xff]
          %v1475 = vld [vmem:[%s448 + $0x78] sm:$0xff]
          %1477 = vset.pattern.permute.xlu0 0
          %1478 = vperm.xlu0 %1477, %v1259
          %v1479 = vpop.permute.xlu0 %1478
          %1482 = vset.pattern.permute.xlu0 0
          %1483 = vperm.xlu0 %1482, %v1260
          %v1484 = vpop.permute.xlu0 %1483
          %1487 = vset.pattern.permute.xlu0 0
          %1488 = vperm.xlu0 %1487, %v1261
          %v1489 = vpop.permute.xlu0 %1488
          %1492 = vset.pattern.permute.xlu0 0
          %1493 = vperm.xlu0 %1492, %v1262
          %v1494 = vpop.permute.xlu0 %1493
          %1497 = vset.pattern.permute.xlu0 0
          %1498 = vperm.xlu0 %1497, %v1263
          %v1499 = vpop.permute.xlu0 %1498
          %1502 = vset.pattern.permute.xlu0 0
          %1503 = vperm.xlu0 %1502, %v1264
          %v1504 = vpop.permute.xlu0 %1503
          %1507 = vset.pattern.permute.xlu0 0
          %1508 = vperm.xlu0 %1507, %v1265
          %v1509 = vpop.permute.xlu0 %1508
          %1512 = vset.pattern.permute.xlu0 0
          %1513 = vperm.xlu0 %1512, %v1266
          %v1514 = vpop.permute.xlu0 %1513
          %1517 = vset.pattern.permute.xlu0 0
          %1518 = vperm.xlu0 %1517, %v1267
          %v1519 = vpop.permute.xlu0 %1518
          %1522 = vset.pattern.permute.xlu0 0
          %1523 = vperm.xlu0 %1522, %v1268
          %v1524 = vpop.permute.xlu0 %1523
          %1527 = vset.pattern.permute.xlu0 0
          %1528 = vperm.xlu0 %1527, %v1269
          %v1529 = vpop.permute.xlu0 %1528
          %1532 = vset.pattern.permute.xlu0 0
          %1533 = vperm.xlu0 %1532, %v1270
          %v1534 = vpop.permute.xlu0 %1533
          %1537 = vset.pattern.permute.xlu0 0
          %1538 = vperm.xlu0 %1537, %v1271
          %v1539 = vpop.permute.xlu0 %1538
          %1542 = vset.pattern.permute.xlu0 0
          %1543 = vperm.xlu0 %1542, %v1272
          %v1544 = vpop.permute.xlu0 %1543
          %1547 = vset.pattern.permute.xlu0 0
          %1548 = vperm.xlu0 %1547, %v1273
          %v1549 = vpop.permute.xlu0 %1548
          %1552 = vset.pattern.permute.xlu0 0
          %1553 = vperm.xlu0 %1552, %v1274
          %v1554 = vpop.permute.xlu0 %1553
          %v1556 = vmul.f32 %v1398, %v1479
          %v1557 = vmul.f32 %v1401, %v1484
          %v1558 = vmul.f32 %v1406, %v1489
          %v1559 = vmul.f32 %v1409, %v1494
          %v1560 = vmul.f32 %v1414, %v1499
          %v1561 = vmul.f32 %v1417, %v1504
          %v1562 = vmul.f32 %v1422, %v1509
          %v1563 = vmul.f32 %v1425, %v1514
          %v1564 = vmul.f32 %v1430, %v1519
          %v1565 = vmul.f32 %v1433, %v1524
          %v1566 = vmul.f32 %v1438, %v1529
          %v1567 = vmul.f32 %v1441, %v1534
          %v1568 = vmul.f32 %v1446, %v1539
          %v1569 = vmul.f32 %v1449, %v1544
          %v1570 = vmul.f32 %v1454, %v1549
          %v1571 = vmul.f32 %v1457, %v1554
          %v1572 = vadd.f32 %v1460, %v1556
          %v1573 = vadd.f32 %v1461, %v1557
          %v1574 = vadd.f32 %v1462, %v1558
          %v1575 = vadd.f32 %v1463, %v1559
          %v1576 = vadd.f32 %v1464, %v1560
          %v1577 = vadd.f32 %v1465, %v1561
          %v1578 = vadd.f32 %v1466, %v1562
          %v1579 = vadd.f32 %v1467, %v1563
          %v1580 = vadd.f32 %v1468, %v1564
          %v1581 = vadd.f32 %v1469, %v1565
          %v1582 = vadd.f32 %v1470, %v1566
          %v1583 = vadd.f32 %v1471, %v1567
          %v1584 = vadd.f32 %v1472, %v1568
          %v1585 = vadd.f32 %v1473, %v1569
          %v1586 = vadd.f32 %v1474, %v1570
          %v1587 = vadd.f32 %v1475, %v1571
          %1588 = vst [vmem:[%s448] sm:$0xff] %v1572
          %1589 = vst [vmem:[%s448 + $0x8] sm:$0xff] %v1573
          %1590 = vst [vmem:[%s448 + $0x10] sm:$0xff] %v1574
          %1591 = vst [vmem:[%s448 + $0x18] sm:$0xff] %v1575
          %1592 = vst [vmem:[%s448 + $0x20] sm:$0xff] %v1576
          %1593 = vst [vmem:[%s448 + $0x28] sm:$0xff] %v1577
          %1594 = vst [vmem:[%s448 + $0x30] sm:$0xff] %v1578
          %1595 = vst [vmem:[%s448 + $0x38] sm:$0xff] %v1579
          %1596 = vst [vmem:[%s448 + $0x40] sm:$0xff] %v1580
          %1597 = vst [vmem:[%s448 + $0x48] sm:$0xff] %v1581
          %1598 = vst [vmem:[%s448 + $0x50] sm:$0xff] %v1582
          %1599 = vst [vmem:[%s448 + $0x58] sm:$0xff] %v1583
          %1600 = vst [vmem:[%s448 + $0x60] sm:$0xff] %v1584
          %1601 = vst [vmem:[%s448 + $0x68] sm:$0xff] %v1585
          %1602 = vst [vmem:[%s448 + $0x70] sm:$0xff] %v1586
          %1603 = vst [vmem:[%s448 + $0x78] sm:$0xff] %v1587
        $region79: #{sage_conv.1} parent=62 // pred_fallthru
          _
        %s1604 = smul.u32 16, %s33
        %p1605 = scmp.lt.s32.totalorder %s1604, 31
        %s1606 = scalar_select %p1605, %s1604, 31
        %s1607 = smul.addr %s1606, 8
        %s1608 = scalar_lea.vmem %s8, %s1607
        // Predicated region
        $region80: #{sage_conv.1} parent=62 // pred_check
          %p1609 = pneg %p234
        $region81: #{sage_conv.1} parent=62 // pred_check_branch
          %1611 = sbr.rel (%p1609) target = $region83
        $region82: #{sage_conv.1} parent=62 // pred_region
          %s1612 = smul.u32 16, %s33
        $region83: #{sage_conv.1} parent=62 // pred_fallthru
          _
      $region63: #{sage_conv.1} parent=5 // pred_fallthru
        _
      %p1613 = scmp.le.s32.totalorder 2, %s24
      // Predicated region
      $region84: #{sage_conv.1} parent=5 // pred_check
        %p1614 = pneg %p1613
      $region85: #{sage_conv.1} parent=5 // pred_check_branch
        %1616 = sbr.rel (%p1614) target = $region87
      $region86: #{sage_conv.1} parent=5 // pred_region
        %s1617 = ssub.s32 %s24, 2
        // Predicated region
        $region88: #{sage_conv.1} parent=86 // pred_check
          %p1618 = pneg %p240
        $region89: #{sage_conv.1} parent=86 // pred_check_branch
          %1620 = sbr.rel (%p1618) target = $region91
        $region90: #{sage_conv.1} parent=86 // pred_region
          %s1621 = smul.u32 16, %s35
          %p1622 = scmp.lt.s32.totalorder %s1621, 31
          %s1623 = scalar_select %p1622, %s1621, 31
          %s1624 = smul.addr %s1623, 8
          %s1625 = scalar_lea.vmem %s8, %s1624
        $region91: #{sage_conv.1} parent=86 // pred_fallthru
          _
      $region87: #{sage_conv.1} parent=5 // pred_fallthru
        _
    $region6: #{sage_conv.1} parent=1 // loop_footer
      %s28 = sadd.s32 1, %s24
    $region7: #{sage_conv.1} parent=1 // loop_footer_branch
      %23 = sbr.rel target = $region3
    $region8: #{sage_conv.1} parent=1 // loop_exit
      _

</llo_original>
